<compile_context>
chip_gen: v7x
topology: tpu7x:2x2x1
jax: 0.10.0
libtpu: 0.0.40
codegen_flags: <defaults>
</compile_context>

<pallas_src>
import numpy as np
import jax
import jax.numpy as jnp
from jax.experimental import pallas as pl
from jax.experimental.pallas import tpu as pltpu

LEAK = 0.2
EPS = 1e-5


# --------------------- constant-matrix construction (host) ------------------ #

def _conv_rg_cat(w_oihw, n, h, w, stride, pad, dtype, row_block=None):
    """Tap-stacked (Rcat, Gcat) so the conv becomes TWO matmuls:
         Z  = Rcat @ Xf                                  # [kh*mo, W*Cin]
         Zc = lane-concat of the kh row-blocks of Z      # [mo, kh*W*Cin]
         Yf = Zc @ Gcat                                  # [mo, Wo*Cout]
       with Xf[n*H+h, w*Cin+c], Yf[n*Ho+ho, wo*Cout+co]; stride + zero-pad folded
       into the 0/1 selection rows of Rcat and the weight placement in Gcat.
       `row_block` (>= n*Ho) zero-pads each per-tap row block for sublane alignment.
    """
    w_np = np.asarray(w_oihw, dtype=np.float32)          # [Cout, Cin, kh, kw]
    c_out, c_in, kh, kw = w_np.shape
    ho = (h + 2 * pad - kh) // stride + 1
    wo = (w + 2 * pad - kw) // stride + 1
    nho = n * ho
    mo = nho if row_block is None else row_block
    assert mo >= nho
    r = np.zeros((kh, mo, n * h), np.float32)
    for i in range(kh):
        for b in range(n):
            for oh in range(ho):
                ih = stride * oh + i - pad
                if 0 <= ih < h:
                    r[i, b * ho + oh, b * h + ih] = 1.0
    g = np.zeros((kh, w * c_in, wo * c_out), np.float32)
    for i in range(kh):
        for ow in range(wo):
            for j in range(kw):
                iw = stride * ow + j - pad
                if 0 <= iw < w:
                    g[i, iw * c_in:(iw + 1) * c_in,
                         ow * c_out:(ow + 1) * c_out] = w_np[:, :, i, j].T
    rcat = jnp.asarray(r.reshape(kh * mo, n * h), dtype)
    gcat = jnp.asarray(g.reshape(kh * w * c_in, wo * c_out), dtype)
    return rcat, gcat, kh, mo, ho, wo


def _bn_mats(c, wo):
    """Lane-group reduce / broadcast matrices for per-channel BN statistics on the
    [rows, wo*c] flattened layout (kept f32; entries are 0/1 and 1/wo)."""
    a_sum = np.tile(np.eye(c, dtype=np.float32) / wo, (wo, 1))   # [wo*c, c]
    a_bc = np.tile(np.eye(c, dtype=np.float32), (1, wo))         # [c, wo*c]
    return jnp.asarray(a_sum), jnp.asarray(a_bc)


# ------------------------------ fused kernel ------------------------------- #

def _make_disc_kernel(dims):
    (kh1, m1), (kh2, m2), (kh3, m3), (kh4, m4) = dims

    def lrelu(v):
        return jnp.where(v >= 0, v, LEAK * v)

    def conv(x, r_ref, g_ref, kh, mo):
        # Two matmuls per conv layer; operand dtype follows the stored constants
        # (bf16 for layers 1-3, f32 for the tiny layer 4), f32 accumulation.
        z = jnp.dot(r_ref[...], x.astype(r_ref.dtype),
                    preferred_element_type=jnp.float32)          # [kh*mo, W*Cin]
        zc = jnp.concatenate(
            [z[i * mo:(i + 1) * mo, :] for i in range(kh)], axis=1)  # [mo, kh*W*Cin]
        return jnp.dot(zc.astype(g_ref.dtype), g_ref[...],
                       preferred_element_type=jnp.float32)       # [mo, Wo*Cout]

    def bn_lrelu(y, gam_ref, bet_ref, asum_ref, abc_ref):
        # One-pass BN on batch statistics; all statistic math stays f32.
        m1r = jnp.mean(y, axis=0, keepdims=True)                 # [1, Wo*C]
        m2r = jnp.mean(y * y, axis=0, keepdims=True)
        m12 = jnp.concatenate([m1r, m2r], axis=0)                # [2, Wo*C]
        st = jnp.dot(m12, asum_ref[...],
                     preferred_element_type=jnp.float32)         # [2, C]
        mean_c = st[0:1, :]
        var_c = st[1:2, :] - mean_c * mean_c                     # biased variance
        scale_c = gam_ref[...] * jax.lax.rsqrt(var_c + EPS)      # gamma folded in
        bias_c = bet_ref[...] - mean_c * scale_c
        sb = jnp.concatenate([scale_c, bias_c], axis=0)          # [2, C]
        sbr = jnp.dot(sb, abc_ref[...],
                      preferred_element_type=jnp.float32)        # [2, Wo*C]
        return lrelu(y * sbr[0:1, :] + sbr[1:2, :])

    def kernel(x_ref,
               r1_ref, g1_ref,
               r2_ref, g2_ref, gam2_ref, bet2_ref, as2_ref, ab2_ref,
               r3_ref, g3_ref, gam3_ref, bet3_ref, as3_ref, ab3_ref,
               r4_ref, g4_ref,
               o_ref):
        x = x_ref[...]                                           # [N*32, 32] f32
        a1 = lrelu(conv(x, r1_ref, g1_ref, kh1, m1))             # [N*16, 128]
        a2 = bn_lrelu(conv(a1, r2_ref, g2_ref, kh2, m2),
                      gam2_ref, bet2_ref, as2_ref, ab2_ref)      # [N*8, 128]
        a3 = bn_lrelu(conv(a2, r3_ref, g3_ref, kh3, m3),
                      gam3_ref, bet3_ref, as3_ref, ab3_ref)      # [N*4, 128]
        o_ref[...] = conv(a3, r4_ref, g4_ref, kh4, m4)           # [8, 2] (rows 4.. = 0)

    return kernel


# --------------------------------- wrapper ---------------------------------- #

def build_discriminator_small(n, h, w, wt1, wt2, gamma2, beta2,
                              wt3, gamma3, beta3, wt4):
    # bf16 matmul operands for layers 1-3; tiny layer 4 stays f32.
    r1, g1, kh1, m1, h1, w1 = _conv_rg_cat(wt1, n, h, w, 2, 1, jnp.bfloat16)
    r2, g2, kh2, m2, h2, w2 = _conv_rg_cat(wt2, n, h1, w1, 2, 1, jnp.bfloat16)
    r3, g3, kh3, m3, h3, w3 = _conv_rg_cat(wt3, n, h2, w2, 2, 1, jnp.bfloat16)
    r4, g4, kh4, m4, h4, w4 = _conv_rg_cat(wt4, n, h3, w3, 1, 0, jnp.float32,
                                           row_block=8)
    c2, c3, c4 = wt2.shape[0], wt3.shape[0], wt4.shape[0]
    as2, ab2 = _bn_mats(c2, w2)
    as3, ab3 = _bn_mats(c3, w3)

    consts = (r1, g1,
              r2, g2,
              jnp.asarray(gamma2, jnp.float32).reshape(1, -1),
              jnp.asarray(beta2, jnp.float32).reshape(1, -1), as2, ab2,
              r3, g3,
              jnp.asarray(gamma3, jnp.float32).reshape(1, -1),
              jnp.asarray(beta3, jnp.float32).reshape(1, -1), as3, ab3,
              r4, g4)

    kernel = _make_disc_kernel(((kh1, m1), (kh2, m2), (kh3, m3), (kh4, m4)))

    n_in = 1 + len(consts)
    vmem_spec = pl.BlockSpec(memory_space=pltpu.MemorySpace.VMEM)
    call = pl.pallas_call(
        kernel,
        out_shape=jax.ShapeDtypeStruct((m4, w4 * c4), jnp.float32),
        in_specs=[vmem_spec] * n_in,
        out_specs=vmem_spec,
    )

    def forward(x_nchw):
        # NCHW, C_in == 1 -> row/channel-flattened [N*H, W] (pure reshape)
        xb = x_nchw.astype(jnp.float32).reshape(n * h, w)
        y = call(xb, *consts)                        # [m4, w4*c4]; pad rows are 0
        y = y[:n * h4].reshape(n, h4, w4, c4)
        return jnp.transpose(y, (0, 3, 1, 2))        # NCHW

    return forward


# ------------------------- pure-JAX reference check ------------------------- #

def _ref_forward(x, w1, w2, g2, b2, w3, g3, b3, w4):
    def conv(x, w, stride, pad):
        return jax.lax.conv_general_dilated(
            x, w, (stride, stride), [(pad, pad), (pad, pad)],
            dimension_numbers=("NCHW", "OIHW", "NCHW"))

    def bn(x, g, b):
        mean = jnp.mean(x, axis=(0, 2, 3), keepdims=True)
        var = jnp.mean(jnp.square(x - mean), axis=(0, 2, 3), keepdims=True)
        return ((x - mean) * jax.lax.rsqrt(var + EPS)
                * g.reshape(1, -1, 1, 1) + b.reshape(1, -1, 1, 1))

    def lrelu(v):
        return jnp.where(v >= 0, v, LEAK * v)

    x = lrelu(conv(x, w1, 2, 1))
    x = lrelu(bn(conv(x, w2, 2, 1), g2, b2))
    x = lrelu(bn(conv(x, w3, 2, 1), g3, b3))
    return conv(x, w4, 1, 0)


# ----------------------------------- main ----------------------------------- #

if __name__ == "__main__":
    ndf = 8
    key = jax.random.PRNGKey(0)
    k_x, k1, k2, k3, k4, kg2, kb2, kg3, kb3 = jax.random.split(key, 9)

    # DCGAN-style init (N(0, 0.02)), torch OIHW layout
    w1_t = 0.02 * jax.random.normal(k1, (ndf, 1, 4, 4), jnp.float32)
    w2_t = 0.02 * jax.random.normal(k2, (2 * ndf, ndf, 4, 4), jnp.float32)
    w3_t = 0.02 * jax.random.normal(k3, (4 * ndf, 2 * ndf, 4, 4), jnp.float32)
    w4_t = 0.02 * jax.random.normal(k4, (1, 4 * ndf, 3, 3), jnp.float32)
    # non-trivial BN affine params to exercise the full BN path
    g2 = 1.0 + 0.1 * jax.random.normal(kg2, (2 * ndf,), jnp.float32)
    b2 = 0.1 * jax.random.normal(kb2, (2 * ndf,), jnp.float32)
    g3 = 1.0 + 0.1 * jax.random.normal(kg3, (4 * ndf,), jnp.float32)
    b3 = 0.1 * jax.random.normal(kb3, (4 * ndf,), jnp.float32)

    # input: N=2, C=1, 32x32  (32 -> 16 -> 8 -> 4 -> conv4(k3,p0) -> 2)
    N, H, W = 2, 32, 32
    x = jax.random.normal(k_x, (N, 1, H, W), jnp.float32)

    forward = jax.jit(build_discriminator_small(
        N, H, W, w1_t, w2_t, g2, b2, w3_t, g3, b3, w4_t))

    out = jax.block_until_ready(forward(x))
    ref = _ref_forward(x, w1_t, w2_t, g2, b2, w3_t, g3, b3, w4_t)

    assert out.shape == (N, 1, 2, 2), out.shape
    # bf16 matmul operands (f32 accumulation) -> looser tolerance than pure f32
    assert jnp.allclose(out, ref, atol=3e-2, rtol=3e-2), (
        float(jnp.max(jnp.abs(out - ref))))

    print("KERNEL_OK")
</pallas_src>

<mosaic_0001>
module attributes {stable_mosaic.version = 11 : i64} {
  func.func @kernel(%arg0: memref<64x32xf32, #tpu.memory_space<vmem>>, %arg1: memref<128x64xbf16, #tpu.memory_space<vmem>>, %arg2: memref<128x128xbf16, #tpu.memory_space<vmem>>, %arg3: memref<64x32xbf16, #tpu.memory_space<vmem>>, %arg4: memref<512x128xbf16, #tpu.memory_space<vmem>>, %arg5: memref<1x16xf32, #tpu.memory_space<vmem>>, %arg6: memref<1x16xf32, #tpu.memory_space<vmem>>, %arg7: memref<128x16xf32, #tpu.memory_space<vmem>>, %arg8: memref<16x128xf32, #tpu.memory_space<vmem>>, %arg9: memref<32x16xbf16, #tpu.memory_space<vmem>>, %arg10: memref<512x128xbf16, #tpu.memory_space<vmem>>, %arg11: memref<1x32xf32, #tpu.memory_space<vmem>>, %arg12: memref<1x32xf32, #tpu.memory_space<vmem>>, %arg13: memref<128x32xf32, #tpu.memory_space<vmem>>, %arg14: memref<32x128xf32, #tpu.memory_space<vmem>>, %arg15: memref<24x8xf32, #tpu.memory_space<vmem>>, %arg16: memref<384x2xf32, #tpu.memory_space<vmem>>, %arg17: memref<8x2xf32, #tpu.memory_space<vmem>>) attributes {dimension_semantics = [], scalar_prefetch = 0 : i64, scratch_operands = 0 : i64, tpu.core_type = #tpu.core_type<tc>} {
    %c0 = arith.constant 0 : index
    %c0_0 = arith.constant 0 : index
    %0 = vector.load %arg0[%c0, %c0_0] : memref<64x32xf32, #tpu.memory_space<vmem>>, vector<64x32xf32>
    %c0_1 = arith.constant 0 : index
    %c0_2 = arith.constant 0 : index
    %1 = vector.load %arg1[%c0_1, %c0_2] : memref<128x64xbf16, #tpu.memory_space<vmem>>, vector<128x64xbf16>
    %2 = arith.truncf %0 : vector<64x32xf32> to vector<64x32xbf16>
    %cst = arith.constant dense<0.000000e+00> : vector<128x32xf32>
    %3 = tpu.matmul %1, %2, %cst {dimension_numbers = #tpu.dot_dimension_numbers<[1], [0], [0], [1], [0, 0, 1, 1], [], []>} : vector<128x64xbf16>, vector<64x32xbf16>, vector<128x32xf32> -> vector<128x32xf32>
    %4 = vector.extract_strided_slice %3 {offsets = [0, 0], sizes = [32, 32], strides = [1, 1]} : vector<128x32xf32> to vector<32x32xf32>
    %5 = vector.extract_strided_slice %3 {offsets = [32, 0], sizes = [32, 32], strides = [1, 1]} : vector<128x32xf32> to vector<32x32xf32>
    %6 = vector.extract_strided_slice %3 {offsets = [64, 0], sizes = [32, 32], strides = [1, 1]} : vector<128x32xf32> to vector<32x32xf32>
    %7 = vector.extract_strided_slice %3 {offsets = [96, 0], sizes = [32, 32], strides = [1, 1]} : vector<128x32xf32> to vector<32x32xf32>
    %8 = tpu.concatenate %4, %5, %6, %7 in 1 : vector<32x32xf32>, vector<32x32xf32>, vector<32x32xf32>, vector<32x32xf32> -> vector<32x128xf32>
    %9 = arith.truncf %8 : vector<32x128xf32> to vector<32x128xbf16>
    %c0_3 = arith.constant 0 : index
    %c0_4 = arith.constant 0 : index
    %10 = vector.load %arg2[%c0_3, %c0_4] : memref<128x128xbf16, #tpu.memory_space<vmem>>, vector<128x128xbf16>
    %cst_5 = arith.constant dense<0.000000e+00> : vector<32x128xf32>
    %11 = tpu.matmul %9, %10, %cst_5 {dimension_numbers = #tpu.dot_dimension_numbers<[1], [0], [0], [1], [0, 0, 1, 1], [], []>} : vector<32x128xbf16>, vector<128x128xbf16>, vector<32x128xf32> -> vector<32x128xf32>
    %cst_6 = arith.constant 0.000000e+00 : f32
    %12 = vector.broadcast %cst_6 : f32 to vector<32x128xf32>
    %13 = arith.cmpf oge, %11, %12 : vector<32x128xf32>
    %cst_7 = arith.constant 2.000000e-01 : f32
    %14 = vector.broadcast %cst_7 : f32 to vector<32x128xf32>
    %15 = arith.mulf %14, %11 : vector<32x128xf32>
    %16 = arith.select %13, %11, %15 : vector<32x128xi1>, vector<32x128xf32>
    %c0_8 = arith.constant 0 : index
    %c0_9 = arith.constant 0 : index
    %17 = vector.load %arg3[%c0_8, %c0_9] : memref<64x32xbf16, #tpu.memory_space<vmem>>, vector<64x32xbf16>
    %18 = arith.truncf %16 : vector<32x128xf32> to vector<32x128xbf16>
    %cst_10 = arith.constant dense<0.000000e+00> : vector<64x128xf32>
    %19 = tpu.matmul %17, %18, %cst_10 {dimension_numbers = #tpu.dot_dimension_numbers<[1], [0], [0], [1], [0, 0, 1, 1], [], []>} : vector<64x32xbf16>, vector<32x128xbf16>, vector<64x128xf32> -> vector<64x128xf32>
    %20 = vector.extract_strided_slice %19 {offsets = [0, 0], sizes = [16, 128], strides = [1, 1]} : vector<64x128xf32> to vector<16x128xf32>
    %21 = vector.extract_strided_slice %19 {offsets = [16, 0], sizes = [16, 128], strides = [1, 1]} : vector<64x128xf32> to vector<16x128xf32>
    %22 = vector.extract_strided_slice %19 {offsets = [32, 0], sizes = [16, 128], strides = [1, 1]} : vector<64x128xf32> to vector<16x128xf32>
    %23 = vector.extract_strided_slice %19 {offsets = [48, 0], sizes = [16, 128], strides = [1, 1]} : vector<64x128xf32> to vector<16x128xf32>
    %24 = tpu.concatenate %20, %21, %22, %23 in 1 : vector<16x128xf32>, vector<16x128xf32>, vector<16x128xf32>, vector<16x128xf32> -> vector<16x512xf32>
    %25 = arith.truncf %24 : vector<16x512xf32> to vector<16x512xbf16>
    %c0_11 = arith.constant 0 : index
    %c0_12 = arith.constant 0 : index
    %26 = vector.load %arg4[%c0_11, %c0_12] : memref<512x128xbf16, #tpu.memory_space<vmem>>, vector<512x128xbf16>
    %cst_13 = arith.constant dense<0.000000e+00> : vector<16x128xf32>
    %27 = tpu.matmul %25, %26, %cst_13 {dimension_numbers = #tpu.dot_dimension_numbers<[1], [0], [0], [1], [0, 0, 1, 1], [], []>} : vector<16x512xbf16>, vector<512x128xbf16>, vector<16x128xf32> -> vector<16x128xf32>
    %cst_14 = arith.constant dense<0.000000e+00> : vector<128xf32>
    %28 = vector.multi_reduction <add>, %27, %cst_14 [0] : vector<16x128xf32> to vector<128xf32>
    %29 = vector.shape_cast %28 : vector<128xf32> to vector<1x128xf32>
    %cst_15 = arith.constant 1.600000e+01 : f32
    %30 = vector.broadcast %cst_15 : f32 to vector<1x128xf32>
    %31 = arith.divf %29, %30 : vector<1x128xf32>
    %32 = arith.mulf %27, %27 : vector<16x128xf32>
    %cst_16 = arith.constant dense<0.000000e+00> : vector<128xf32>
    %33 = vector.multi_reduction <add>, %32, %cst_16 [0] : vector<16x128xf32> to vector<128xf32>
    %34 = vector.shape_cast %33 : vector<128xf32> to vector<1x128xf32>
    %cst_17 = arith.constant 1.600000e+01 : f32
    %35 = vector.broadcast %cst_17 : f32 to vector<1x128xf32>
    %36 = arith.divf %34, %35 : vector<1x128xf32>
    %37 = tpu.concatenate %31, %36 in 0 : vector<1x128xf32>, vector<1x128xf32> -> vector<2x128xf32>
    %c0_18 = arith.constant 0 : index
    %c0_19 = arith.constant 0 : index
    %38 = vector.load %arg7[%c0_18, %c0_19] : memref<128x16xf32, #tpu.memory_space<vmem>>, vector<128x16xf32>
    %cst_20 = arith.constant dense<0.000000e+00> : vector<2x16xf32>
    %39 = tpu.matmul %37, %38, %cst_20 {dimension_numbers = #tpu.dot_dimension_numbers<[1], [0], [0], [1], [0, 0, 1, 1], [], []>} : vector<2x128xf32>, vector<128x16xf32>, vector<2x16xf32> -> vector<2x16xf32>
    %40 = vector.extract_strided_slice %39 {offsets = [0, 0], sizes = [1, 16], strides = [1, 1]} : vector<2x16xf32> to vector<1x16xf32>
    %41 = vector.extract_strided_slice %39 {offsets = [1, 0], sizes = [1, 16], strides = [1, 1]} : vector<2x16xf32> to vector<1x16xf32>
    %42 = arith.mulf %40, %40 : vector<1x16xf32>
    %43 = arith.subf %41, %42 : vector<1x16xf32>
    %c0_21 = arith.constant 0 : index
    %c0_22 = arith.constant 0 : index
    %44 = vector.load %arg5[%c0_21, %c0_22] : memref<1x16xf32, #tpu.memory_space<vmem>>, vector<1x16xf32>
    %cst_23 = arith.constant 9.99999974E-6 : f32
    %45 = vector.broadcast %cst_23 : f32 to vector<1x16xf32>
    %46 = arith.addf %43, %45 : vector<1x16xf32>
    %47 = math.rsqrt %46 : vector<1x16xf32>
    %48 = arith.mulf %44, %47 : vector<1x16xf32>
    %c0_24 = arith.constant 0 : index
    %c0_25 = arith.constant 0 : index
    %49 = vector.load %arg6[%c0_24, %c0_25] : memref<1x16xf32, #tpu.memory_space<vmem>>, vector<1x16xf32>
    %50 = arith.mulf %40, %48 : vector<1x16xf32>
    %51 = arith.subf %49, %50 : vector<1x16xf32>
    %52 = tpu.concatenate %48, %51 in 0 : vector<1x16xf32>, vector<1x16xf32> -> vector<2x16xf32>
    %c0_26 = arith.constant 0 : index
    %c0_27 = arith.constant 0 : index
    %53 = vector.load %arg8[%c0_26, %c0_27] : memref<16x128xf32, #tpu.memory_space<vmem>>, vector<16x128xf32>
    %cst_28 = arith.constant dense<0.000000e+00> : vector<2x128xf32>
    %54 = tpu.matmul %52, %53, %cst_28 {dimension_numbers = #tpu.dot_dimension_numbers<[1], [0], [0], [1], [0, 0, 1, 1], [], []>} : vector<2x16xf32>, vector<16x128xf32>, vector<2x128xf32> -> vector<2x128xf32>
    %55 = vector.extract_strided_slice %54 {offsets = [0, 0], sizes = [1, 128], strides = [1, 1]} : vector<2x128xf32> to vector<1x128xf32>
    %56 = vector.broadcast %55 : vector<1x128xf32> to vector<16x128xf32>
    %57 = arith.mulf %27, %56 : vector<16x128xf32>
    %58 = vector.extract_strided_slice %54 {offsets = [1, 0], sizes = [1, 128], strides = [1, 1]} : vector<2x128xf32> to vector<1x128xf32>
    %59 = vector.broadcast %58 : vector<1x128xf32> to vector<16x128xf32>
    %60 = arith.addf %57, %59 : vector<16x128xf32>
    %cst_29 = arith.constant 0.000000e+00 : f32
    %61 = vector.broadcast %cst_29 : f32 to vector<16x128xf32>
    %62 = arith.cmpf oge, %60, %61 : vector<16x128xf32>
    %cst_30 = arith.constant 2.000000e-01 : f32
    %63 = vector.broadcast %cst_30 : f32 to vector<16x128xf32>
    %64 = arith.mulf %63, %60 : vector<16x128xf32>
    %65 = arith.select %62, %60, %64 : vector<16x128xi1>, vector<16x128xf32>
    %c0_31 = arith.constant 0 : index
    %c0_32 = arith.constant 0 : index
    %66 = vector.load %arg9[%c0_31, %c0_32] : memref<32x16xbf16, #tpu.memory_space<vmem>>, vector<32x16xbf16>
    %67 = arith.truncf %65 : vector<16x128xf32> to vector<16x128xbf16>
    %cst_33 = arith.constant dense<0.000000e+00> : vector<32x128xf32>
    %68 = tpu.matmul %66, %67, %cst_33 {dimension_numbers = #tpu.dot_dimension_numbers<[1], [0], [0], [1], [0, 0, 1, 1], [], []>} : vector<32x16xbf16>, vector<16x128xbf16>, vector<32x128xf32> -> vector<32x128xf32>
    %69 = vector.extract_strided_slice %68 {offsets = [0, 0], sizes = [8, 128], strides = [1, 1]} : vector<32x128xf32> to vector<8x128xf32>
    %70 = vector.extract_strided_slice %68 {offsets = [8, 0], sizes = [8, 128], strides = [1, 1]} : vector<32x128xf32> to vector<8x128xf32>
    %71 = vector.extract_strided_slice %68 {offsets = [16, 0], sizes = [8, 128], strides = [1, 1]} : vector<32x128xf32> to vector<8x128xf32>
    %72 = vector.extract_strided_slice %68 {offsets = [24, 0], sizes = [8, 128], strides = [1, 1]} : vector<32x128xf32> to vector<8x128xf32>
    %73 = tpu.concatenate %69, %70, %71, %72 in 1 : vector<8x128xf32>, vector<8x128xf32>, vector<8x128xf32>, vector<8x128xf32> -> vector<8x512xf32>
    %74 = arith.truncf %73 : vector<8x512xf32> to vector<8x512xbf16>
    %c0_34 = arith.constant 0 : index
    %c0_35 = arith.constant 0 : index
    %75 = vector.load %arg10[%c0_34, %c0_35] : memref<512x128xbf16, #tpu.memory_space<vmem>>, vector<512x128xbf16>
    %cst_36 = arith.constant dense<0.000000e+00> : vector<8x128xf32>
    %76 = tpu.matmul %74, %75, %cst_36 {dimension_numbers = #tpu.dot_dimension_numbers<[1], [0], [0], [1], [0, 0, 1, 1], [], []>} : vector<8x512xbf16>, vector<512x128xbf16>, vector<8x128xf32> -> vector<8x128xf32>
    %cst_37 = arith.constant dense<0.000000e+00> : vector<128xf32>
    %77 = vector.multi_reduction <add>, %76, %cst_37 [0] : vector<8x128xf32> to vector<128xf32>
    %78 = vector.shape_cast %77 : vector<128xf32> to vector<1x128xf32>
    %cst_38 = arith.constant 8.000000e+00 : f32
    %79 = vector.broadcast %cst_38 : f32 to vector<1x128xf32>
    %80 = arith.divf %78, %79 : vector<1x128xf32>
    %81 = arith.mulf %76, %76 : vector<8x128xf32>
    %cst_39 = arith.constant dense<0.000000e+00> : vector<128xf32>
    %82 = vector.multi_reduction <add>, %81, %cst_39 [0] : vector<8x128xf32> to vector<128xf32>
    %83 = vector.shape_cast %82 : vector<128xf32> to vector<1x128xf32>
    %cst_40 = arith.constant 8.000000e+00 : f32
    %84 = vector.broadcast %cst_40 : f32 to vector<1x128xf32>
    %85 = arith.divf %83, %84 : vector<1x128xf32>
    %86 = tpu.concatenate %80, %85 in 0 : vector<1x128xf32>, vector<1x128xf32> -> vector<2x128xf32>
    %c0_41 = arith.constant 0 : index
    %c0_42 = arith.constant 0 : index
    %87 = vector.load %arg13[%c0_41, %c0_42] : memref<128x32xf32, #tpu.memory_space<vmem>>, vector<128x32xf32>
    %cst_43 = arith.constant dense<0.000000e+00> : vector<2x32xf32>
    %88 = tpu.matmul %86, %87, %cst_43 {dimension_numbers = #tpu.dot_dimension_numbers<[1], [0], [0], [1], [0, 0, 1, 1], [], []>} : vector<2x128xf32>, vector<128x32xf32>, vector<2x32xf32> -> vector<2x32xf32>
    %89 = vector.extract_strided_slice %88 {offsets = [0, 0], sizes = [1, 32], strides = [1, 1]} : vector<2x32xf32> to vector<1x32xf32>
    %90 = vector.extract_strided_slice %88 {offsets = [1, 0], sizes = [1, 32], strides = [1, 1]} : vector<2x32xf32> to vector<1x32xf32>
    %91 = arith.mulf %89, %89 : vector<1x32xf32>
    %92 = arith.subf %90, %91 : vector<1x32xf32>
    %c0_44 = arith.constant 0 : index
    %c0_45 = arith.constant 0 : index
    %93 = vector.load %arg11[%c0_44, %c0_45] : memref<1x32xf32, #tpu.memory_space<vmem>>, vector<1x32xf32>
    %cst_46 = arith.constant 9.99999974E-6 : f32
    %94 = vector.broadcast %cst_46 : f32 to vector<1x32xf32>
    %95 = arith.addf %92, %94 : vector<1x32xf32>
    %96 = math.rsqrt %95 : vector<1x32xf32>
    %97 = arith.mulf %93, %96 : vector<1x32xf32>
    %c0_47 = arith.constant 0 : index
    %c0_48 = arith.constant 0 : index
    %98 = vector.load %arg12[%c0_47, %c0_48] : memref<1x32xf32, #tpu.memory_space<vmem>>, vector<1x32xf32>
    %99 = arith.mulf %89, %97 : vector<1x32xf32>
    %100 = arith.subf %98, %99 : vector<1x32xf32>
    %101 = tpu.concatenate %97, %100 in 0 : vector<1x32xf32>, vector<1x32xf32> -> vector<2x32xf32>
    %c0_49 = arith.constant 0 : index
    %c0_50 = arith.constant 0 : index
    %102 = vector.load %arg14[%c0_49, %c0_50] : memref<32x128xf32, #tpu.memory_space<vmem>>, vector<32x128xf32>
    %cst_51 = arith.constant dense<0.000000e+00> : vector<2x128xf32>
    %103 = tpu.matmul %101, %102, %cst_51 {dimension_numbers = #tpu.dot_dimension_numbers<[1], [0], [0], [1], [0, 0, 1, 1], [], []>} : vector<2x32xf32>, vector<32x128xf32>, vector<2x128xf32> -> vector<2x128xf32>
    %104 = vector.extract_strided_slice %103 {offsets = [0, 0], sizes = [1, 128], strides = [1, 1]} : vector<2x128xf32> to vector<1x128xf32>
    %105 = vector.broadcast %104 : vector<1x128xf32> to vector<8x128xf32>
    %106 = arith.mulf %76, %105 : vector<8x128xf32>
    %107 = vector.extract_strided_slice %103 {offsets = [1, 0], sizes = [1, 128], strides = [1, 1]} : vector<2x128xf32> to vector<1x128xf32>
    %108 = vector.broadcast %107 : vector<1x128xf32> to vector<8x128xf32>
    %109 = arith.addf %106, %108 : vector<8x128xf32>
    %cst_52 = arith.constant 0.000000e+00 : f32
    %110 = vector.broadcast %cst_52 : f32 to vector<8x128xf32>
    %111 = arith.cmpf oge, %109, %110 : vector<8x128xf32>
    %cst_53 = arith.constant 2.000000e-01 : f32
    %112 = vector.broadcast %cst_53 : f32 to vector<8x128xf32>
    %113 = arith.mulf %112, %109 : vector<8x128xf32>
    %114 = arith.select %111, %109, %113 : vector<8x128xi1>, vector<8x128xf32>
    %c0_54 = arith.constant 0 : index
    %c0_55 = arith.constant 0 : index
    %115 = vector.load %arg15[%c0_54, %c0_55] : memref<24x8xf32, #tpu.memory_space<vmem>>, vector<24x8xf32>
    %cst_56 = arith.constant dense<0.000000e+00> : vector<24x128xf32>
    %116 = tpu.matmul %115, %114, %cst_56 {dimension_numbers = #tpu.dot_dimension_numbers<[1], [0], [0], [1], [0, 0, 1, 1], [], []>} : vector<24x8xf32>, vector<8x128xf32>, vector<24x128xf32> -> vector<24x128xf32>
    %117 = vector.extract_strided_slice %116 {offsets = [0, 0], sizes = [8, 128], strides = [1, 1]} : vector<24x128xf32> to vector<8x128xf32>
    %118 = vector.extract_strided_slice %116 {offsets = [8, 0], sizes = [8, 128], strides = [1, 1]} : vector<24x128xf32> to vector<8x128xf32>
    %119 = vector.extract_strided_slice %116 {offsets = [16, 0], sizes = [8, 128], strides = [1, 1]} : vector<24x128xf32> to vector<8x128xf32>
    %120 = tpu.concatenate %117, %118, %119 in 1 : vector<8x128xf32>, vector<8x128xf32>, vector<8x128xf32> -> vector<8x384xf32>
    %c0_57 = arith.constant 0 : index
    %c0_58 = arith.constant 0 : index
    %121 = vector.load %arg16[%c0_57, %c0_58] : memref<384x2xf32, #tpu.memory_space<vmem>>, vector<384x2xf32>
    %cst_59 = arith.constant dense<0.000000e+00> : vector<8x2xf32>
    %122 = tpu.matmul %120, %121, %cst_59 {dimension_numbers = #tpu.dot_dimension_numbers<[1], [0], [0], [1], [0, 0, 1, 1], [], []>} : vector<8x384xf32>, vector<384x2xf32>, vector<8x2xf32> -> vector<8x2xf32>
    %c0_60 = arith.constant 0 : index
    %c0_61 = arith.constant 0 : index
    %123 = vector.load %arg17[%c0_60, %c0_61] : memref<8x2xf32, #tpu.memory_space<vmem>>, vector<8x2xf32>
    tpu.vector_store %arg17[%c0_60, %c0_61], %122 {strides = array<i32>} : memref<8x2xf32, #tpu.memory_space<vmem>>, vector<8x2xf32>,
    return
  }
}

</mosaic_0001>

<llo_original>
// kernel: forward.1
$region0: #{forward.1}
  #allocation0 [shape = 'u32[]', space=smem, size = 0x4, offset = 0x4, fixed_abs, tag = 'smem constant byte address 0x4 - core index']
  #allocation1 [shape = 'u32[144,128]{1,0:T(1,128)}', space=vmem, size = 0x12000, scoped, tag = 'internal scratch']
  %s0 = inlined_call_operand.hbm [shape: f32[64,32], index: 0, kind: input, shape index: {}]
  %s1 = inlined_call_operand.hbm [shape: bf16[128,64], index: 1, kind: input, shape index: {}]
  %s2 = inlined_call_operand.vmem [shape: bf16[128,128], index: 2, kind: input, shape index: {}]
  %s3 = inlined_call_operand.hbm [shape: bf16[64,32], index: 3, kind: input, shape index: {}]
  %s4 = inlined_call_operand.hbm [shape: bf16[512,128], index: 4, kind: input, shape index: {}]
  %s5 = inlined_call_operand.hbm [shape: f32[1,16], index: 5, kind: input, shape index: {}]
  %s6 = inlined_call_operand.vmem [shape: f32[1,16], index: 6, kind: input, shape index: {}]
  %s7 = inlined_call_operand.hbm [shape: f32[128,16], index: 7, kind: input, shape index: {}]
  %s8 = inlined_call_operand.hbm [shape: f32[16,128], index: 8, kind: input, shape index: {}]
  %s9 = inlined_call_operand.vmem [shape: bf16[32,16], index: 9, kind: input, shape index: {}]
  %s10 = inlined_call_operand.hbm [shape: bf16[512,128], index: 10, kind: input, shape index: {}]
  %s11 = inlined_call_operand.vmem [shape: f32[1,32], index: 11, kind: input, shape index: {}]
  %s12 = inlined_call_operand.vmem [shape: f32[1,32], index: 12, kind: input, shape index: {}]
  %s13 = inlined_call_operand.hbm [shape: f32[128,32], index: 13, kind: input, shape index: {}]
  %s14 = inlined_call_operand.hbm [shape: f32[32,128], index: 14, kind: input, shape index: {}]
  %s15 = inlined_call_operand.hbm [shape: f32[24,8], index: 15, kind: input, shape index: {}]
  %s16 = inlined_call_operand.hbm [shape: f32[384,2], index: 16, kind: input, shape index: {}]
  %s17 = inlined_call_operand.vmem [shape: f32[8,2], index: 17, kind: output, shape index: {}]
  %s18 = sld [smem:[#allocation0]]
  $region126: #{forward.1} parent=0
    _
  %s20 = ssub.s32 1, %s18
  %s21 = scalar_select 0, %s20, %s18
  $region1: #{forward.1} parent=0
    #allocation2 [shape = 'u8[32768]{0}', space=vmem, size = 0x8000, scoped, tag = 'input window, operand 0, single buffered']
    #allocation3 [shape = 's32[1]{0}', space=sflag, size = 0x4, scoped, tag = 'scoped memory for forward.1']
    #allocation4 [shape = 'u8[32768]{0}', space=vmem, size = 0x8000, scoped, tag = 'input window, operand 1, single buffered']
    #allocation5 [shape = 's32[1]{0}', space=sflag, size = 0x4, scoped, tag = 'scoped memory for forward.1']
    #allocation6 [shape = 'u8[16384]{0}', space=vmem, size = 0x4000, scoped, tag = 'input window, operand 3, single buffered']
    #allocation7 [shape = 'u8[131072]{0}', space=vmem, size = 0x20000, scoped, tag = 'input window, operand 4, single buffered']
    #allocation8 [shape = 's32[1]{0}', space=sflag, size = 0x4, scoped, tag = 'scoped memory for forward.1']
    #allocation9 [shape = 'u8[512]{0}', space=vmem, size = 0x400, scoped, tag = 'input window, operand 5, single buffered']
    #allocation10 [shape = 'u8[65536]{0}', space=vmem, size = 0x10000, scoped, tag = 'input window, operand 7, single buffered']
    #allocation11 [shape = 's32[1]{0}', space=sflag, size = 0x4, scoped, tag = 'scoped memory for forward.1']
    #allocation12 [shape = 'u8[8192]{0}', space=vmem, size = 0x2000, scoped, tag = 'input window, operand 8, single buffered']
    #allocation13 [shape = 'u8[131072]{0}', space=vmem, size = 0x20000, scoped, tag = 'input window, operand 10, single buffered']
    #allocation14 [shape = 's32[1]{0}', space=sflag, size = 0x4, scoped, tag = 'scoped memory for forward.1']
    #allocation15 [shape = 'u8[65536]{0}', space=vmem, size = 0x10000, scoped, tag = 'input window, operand 13, single buffered']
    #allocation16 [shape = 'u8[16384]{0}', space=vmem, size = 0x4000, scoped, tag = 'input window, operand 14, single buffered']
    #allocation17 [shape = 's32[1]{0}', space=sflag, size = 0x4, scoped, tag = 'scoped memory for forward.1']
    #allocation18 [shape = 'u8[12288]{0}', space=vmem, size = 0x3000, scoped, tag = 'input window, operand 15, single buffered']
    #allocation19 [shape = 'u8[196608]{0}', space=vmem, size = 0x30000, scoped, tag = 'input window, operand 16, single buffered']
    #allocation20 [shape = 's32[1]{0}', space=sflag, size = 0x4, scoped, tag = 'scoped memory for forward.1']
    %22 = vsyncpa [#allocation3], 0
    %23 = vsyncpa [#allocation5], 0
    %24 = vsyncpa [#allocation8], 0
    %25 = vsyncpa [#allocation11], 0
    %26 = vsyncpa [#allocation14], 0
    %27 = vsyncpa [#allocation17], 0
    %28 = vsyncpa [#allocation20], 0
    // Predicated region
    $region2: #{forward.1} parent=1 // pred_check
      _
    $region3: #{forward.1} parent=1 // pred_check_branch
      %30 = sbr.rel (0) target = $region5
    $region4: #{forward.1} parent=1 // pred_region
      %s32 = ssub.s32 1024, 1024
      %33 = vsyncadd [#allocation3], %s32
      %s34 = sshll.u32 [#allocation2], 4
      %s35 = int_to_ptr.vmem [resolvable:$true] %s34
      %40 = dma.hbm_to_vmem [thread:$0]  %s0, 1024, %s35, [#allocation3], 128, 128, 8
    $region5: #{forward.1} parent=1 // pred_fallthru
      _
    // Predicated region
    $region6: #{forward.1} parent=1 // pred_check
      _
    $region7: #{forward.1} parent=1 // pred_check_branch
      %42 = sbr.rel (0) target = $region9
    $region8: #{forward.1} parent=1 // pred_region
      %s44 = ssub.s32 1024, 1024
      %45 = vsyncadd [#allocation5], %s44
      %s46 = sshll.u32 [#allocation4], 4
      %s47 = int_to_ptr.vmem [resolvable:$true] %s46
      %52 = dma.hbm_to_vmem [thread:$0]  %s1, 1024, %s47, [#allocation5], 64, 64, 4
    $region9: #{forward.1} parent=1 // pred_fallthru
      _
    // Predicated region
    $region10: #{forward.1} parent=1 // pred_check
      _
    $region11: #{forward.1} parent=1 // pred_check_branch
      %54 = sbr.rel (0) target = $region13
    $region12: #{forward.1} parent=1 // pred_region
      _
    $region13: #{forward.1} parent=1 // pred_fallthru
      _
    // Predicated region
    $region14: #{forward.1} parent=1 // pred_check
      _
    $region15: #{forward.1} parent=1 // pred_check_branch
      %56 = sbr.rel (0) target = $region17
    $region16: #{forward.1} parent=1 // pred_region
      %s58 = ssub.s32 512, 512
      %59 = vsyncadd [#allocation5], %s58
      %s60 = sshll.u32 [#allocation6], 4
      %s61 = int_to_ptr.vmem [resolvable:$true] %s60
      %66 = dma.hbm_to_vmem [thread:$0]  %s3, 512, %s61, [#allocation5], 64, 64, 4
    $region17: #{forward.1} parent=1 // pred_fallthru
      _
    // Predicated region
    $region18: #{forward.1} parent=1 // pred_check
      _
    $region19: #{forward.1} parent=1 // pred_check_branch
      %68 = sbr.rel (0) target = $region21
    $region20: #{forward.1} parent=1 // pred_region
      %s70 = ssub.s32 4096, 4096
      %71 = vsyncadd [#allocation8], %s70
      %s72 = sshll.u32 [#allocation7], 4
      %s73 = int_to_ptr.vmem [resolvable:$true] %s72
      %78 = dma.hbm_to_vmem [thread:$0]  %s4, 4096, %s73, [#allocation8], 64, 64, 4
    $region21: #{forward.1} parent=1 // pred_fallthru
      _
    // Predicated region
    $region22: #{forward.1} parent=1 // pred_check
      _
    $region23: #{forward.1} parent=1 // pred_check_branch
      %80 = sbr.rel (0) target = $region25
    $region24: #{forward.1} parent=1 // pred_region
      %s82 = ssub.s32 16, 16
      %83 = vsyncadd [#allocation8], %s82
      %s85 = sshll.u32 [#allocation9], 4
      %s86 = int_to_ptr.vmem [resolvable:$true] %s85
      %88 = dma.hbm_to_vmem [thread:$0]  %s5, 16, %s86, [#allocation8]
    $region25: #{forward.1} parent=1 // pred_fallthru
      _
    // Predicated region
    $region26: #{forward.1} parent=1 // pred_check
      _
    $region27: #{forward.1} parent=1 // pred_check_branch
      %90 = sbr.rel (0) target = $region29
    $region28: #{forward.1} parent=1 // pred_region
      _
    $region29: #{forward.1} parent=1 // pred_fallthru
      _
    // Predicated region
    $region30: #{forward.1} parent=1 // pred_check
      _
    $region31: #{forward.1} parent=1 // pred_check_branch
      %92 = sbr.rel (0) target = $region33
    $region32: #{forward.1} parent=1 // pred_region
      %s94 = ssub.s32 2048, 2048
      %95 = vsyncadd [#allocation11], %s94
      %s96 = sshll.u32 [#allocation10], 4
      %s97 = int_to_ptr.vmem [resolvable:$true] %s96
      %102 = dma.hbm_to_vmem [thread:$0]  %s7, 2048, %s97, [#allocation11], 128, 128, 8
    $region33: #{forward.1} parent=1 // pred_fallthru
      _
    // Predicated region
    $region34: #{forward.1} parent=1 // pred_check
      _
    $region35: #{forward.1} parent=1 // pred_check_branch
      %104 = sbr.rel (0) target = $region37
    $region36: #{forward.1} parent=1 // pred_region
      %s106 = ssub.s32 256, 256
      %107 = vsyncadd [#allocation11], %s106
      %s108 = sshll.u32 [#allocation12], 4
      %s109 = int_to_ptr.vmem [resolvable:$true] %s108
      %114 = dma.hbm_to_vmem [thread:$0]  %s8, 256, %s109, [#allocation11], 128, 128, 8
    $region37: #{forward.1} parent=1 // pred_fallthru
      _
    // Predicated region
    $region38: #{forward.1} parent=1 // pred_check
      _
    $region39: #{forward.1} parent=1 // pred_check_branch
      %116 = sbr.rel (0) target = $region41
    $region40: #{forward.1} parent=1 // pred_region
      _
    $region41: #{forward.1} parent=1 // pred_fallthru
      _
    // Predicated region
    $region42: #{forward.1} parent=1 // pred_check
      _
    $region43: #{forward.1} parent=1 // pred_check_branch
      %118 = sbr.rel (0) target = $region45
    $region44: #{forward.1} parent=1 // pred_region
      %s120 = ssub.s32 4096, 4096
      %121 = vsyncadd [#allocation14], %s120
      %s122 = sshll.u32 [#allocation13], 4
      %s123 = int_to_ptr.vmem [resolvable:$true] %s122
      %128 = dma.hbm_to_vmem [thread:$0]  %s10, 4096, %s123, [#allocation14], 64, 64, 4
    $region45: #{forward.1} parent=1 // pred_fallthru
      _
    // Predicated region
    $region46: #{forward.1} parent=1 // pred_check
      _
    $region47: #{forward.1} parent=1 // pred_check_branch
      %130 = sbr.rel (0) target = $region49
    $region48: #{forward.1} parent=1 // pred_region
      _
    $region49: #{forward.1} parent=1 // pred_fallthru
      _
    // Predicated region
    $region50: #{forward.1} parent=1 // pred_check
      _
    $region51: #{forward.1} parent=1 // pred_check_branch
      %132 = sbr.rel (0) target = $region53
    $region52: #{forward.1} parent=1 // pred_region
      _
    $region53: #{forward.1} parent=1 // pred_fallthru
      _
    // Predicated region
    $region54: #{forward.1} parent=1 // pred_check
      _
    $region55: #{forward.1} parent=1 // pred_check_branch
      %134 = sbr.rel (0) target = $region57
    $region56: #{forward.1} parent=1 // pred_region
      %s136 = ssub.s32 2048, 2048
      %137 = vsyncadd [#allocation14], %s136
      %s138 = sshll.u32 [#allocation15], 4
      %s139 = int_to_ptr.vmem [resolvable:$true] %s138
      %144 = dma.hbm_to_vmem [thread:$0]  %s13, 2048, %s139, [#allocation14], 128, 128, 8
    $region57: #{forward.1} parent=1 // pred_fallthru
      _
    // Predicated region
    $region58: #{forward.1} parent=1 // pred_check
      _
    $region59: #{forward.1} parent=1 // pred_check_branch
      %146 = sbr.rel (0) target = $region61
    $region60: #{forward.1} parent=1 // pred_region
      %s148 = ssub.s32 512, 512
      %149 = vsyncadd [#allocation17], %s148
      %s150 = sshll.u32 [#allocation16], 4
      %s151 = int_to_ptr.vmem [resolvable:$true] %s150
      %156 = dma.hbm_to_vmem [thread:$0]  %s14, 512, %s151, [#allocation17], 128, 128, 8
    $region61: #{forward.1} parent=1 // pred_fallthru
      _
    // Predicated region
    $region62: #{forward.1} parent=1 // pred_check
      _
    $region63: #{forward.1} parent=1 // pred_check_branch
      %158 = sbr.rel (0) target = $region65
    $region64: #{forward.1} parent=1 // pred_region
      %s160 = ssub.s32 384, 384
      %161 = vsyncadd [#allocation17], %s160
      %s162 = sshll.u32 [#allocation18], 4
      %s163 = int_to_ptr.vmem [resolvable:$true] %s162
      %168 = dma.hbm_to_vmem [thread:$0]  %s15, 384, %s163, [#allocation17], 128, 128, 8
    $region65: #{forward.1} parent=1 // pred_fallthru
      _
    // Predicated region
    $region66: #{forward.1} parent=1 // pred_check
      _
    $region67: #{forward.1} parent=1 // pred_check_branch
      %170 = sbr.rel (0) target = $region69
    $region68: #{forward.1} parent=1 // pred_region
      %s172 = ssub.s32 6144, 6144
      %173 = vsyncadd [#allocation20], %s172
      %s174 = sshll.u32 [#allocation19], 4
      %s175 = int_to_ptr.vmem [resolvable:$true] %s174
      %180 = dma.hbm_to_vmem [thread:$0]  %s16, 6144, %s175, [#allocation20], 128, 128, 8
    $region69: #{forward.1} parent=1 // pred_fallthru
      _
    // Predicated region
    $region70: #{forward.1} parent=1 // pred_check
      _
    $region71: #{forward.1} parent=1 // pred_check_branch
      %182 = sbr.rel (0) target = $region73
    $region72: #{forward.1} parent=1 // pred_region
      %183 = dma.done [#allocation3], 1024
    $region73: #{forward.1} parent=1 // pred_fallthru
      _
    // Predicated region
    $region74: #{forward.1} parent=1 // pred_check
      _
    $region75: #{forward.1} parent=1 // pred_check_branch
      %185 = sbr.rel (0) target = $region77
    $region76: #{forward.1} parent=1 // pred_region
      %186 = dma.done [#allocation5], 1024
    $region77: #{forward.1} parent=1 // pred_fallthru
      _
    // Predicated region
    $region78: #{forward.1} parent=1 // pred_check
      _
    $region79: #{forward.1} parent=1 // pred_check_branch
      %188 = sbr.rel (0) target = $region81
    $region80: #{forward.1} parent=1 // pred_region
      %189 = dma.done [#allocation5], 512
    $region81: #{forward.1} parent=1 // pred_fallthru
      _
    // Predicated region
    $region82: #{forward.1} parent=1 // pred_check
      _
    $region83: #{forward.1} parent=1 // pred_check_branch
      %191 = sbr.rel (0) target = $region85
    $region84: #{forward.1} parent=1 // pred_region
      %192 = dma.done [#allocation8], 4096
    $region85: #{forward.1} parent=1 // pred_fallthru
      _
    // Predicated region
    $region86: #{forward.1} parent=1 // pred_check
      _
    $region87: #{forward.1} parent=1 // pred_check_branch
      %194 = sbr.rel (0) target = $region89
    $region88: #{forward.1} parent=1 // pred_region
      %195 = dma.done [#allocation8], 16
    $region89: #{forward.1} parent=1 // pred_fallthru
      _
    // Predicated region
    $region90: #{forward.1} parent=1 // pred_check
      _
    $region91: #{forward.1} parent=1 // pred_check_branch
      %197 = sbr.rel (0) target = $region93
    $region92: #{forward.1} parent=1 // pred_region
      %198 = dma.done [#allocation11], 2048
    $region93: #{forward.1} parent=1 // pred_fallthru
      _
    // Predicated region
    $region94: #{forward.1} parent=1 // pred_check
      _
    $region95: #{forward.1} parent=1 // pred_check_branch
      %200 = sbr.rel (0) target = $region97
    $region96: #{forward.1} parent=1 // pred_region
      %201 = dma.done [#allocation11], 256
    $region97: #{forward.1} parent=1 // pred_fallthru
      _
    // Predicated region
    $region98: #{forward.1} parent=1 // pred_check
      _
    $region99: #{forward.1} parent=1 // pred_check_branch
      %203 = sbr.rel (0) target = $region101
    $region100: #{forward.1} parent=1 // pred_region
      %204 = dma.done [#allocation14], 4096
    $region101: #{forward.1} parent=1 // pred_fallthru
      _
    // Predicated region
    $region102: #{forward.1} parent=1 // pred_check
      _
    $region103: #{forward.1} parent=1 // pred_check_branch
      %206 = sbr.rel (0) target = $region105
    $region104: #{forward.1} parent=1 // pred_region
      %207 = dma.done [#allocation14], 2048
    $region105: #{forward.1} parent=1 // pred_fallthru
      _
    // Predicated region
    $region106: #{forward.1} parent=1 // pred_check
      _
    $region107: #{forward.1} parent=1 // pred_check_branch
      %209 = sbr.rel (0) target = $region109
    $region108: #{forward.1} parent=1 // pred_region
      %210 = dma.done [#allocation17], 512
    $region109: #{forward.1} parent=1 // pred_fallthru
      _
    // Predicated region
    $region110: #{forward.1} parent=1 // pred_check
      _
    $region111: #{forward.1} parent=1 // pred_check_branch
      %212 = sbr.rel (0) target = $region113
    $region112: #{forward.1} parent=1 // pred_region
      %213 = dma.done [#allocation17], 384
    $region113: #{forward.1} parent=1 // pred_fallthru
      _
    // Predicated region
    $region114: #{forward.1} parent=1 // pred_check
      _
    $region115: #{forward.1} parent=1 // pred_check_branch
      %215 = sbr.rel (0) target = $region117
    $region116: #{forward.1} parent=1 // pred_region
      %216 = dma.done [#allocation20], 6144
    $region117: #{forward.1} parent=1 // pred_fallthru
      _
    %v218 = vld [vmem:[#allocation2] sm:$0xff]
    %v219 = vld [vmem:[#allocation2 + $0x8] sm:$0xff]
    %v220 = vld [vmem:[#allocation2 + $0x10] sm:$0xff]
    %v221 = vld [vmem:[#allocation2 + $0x18] sm:$0xff]
    %v222 = vld [vmem:[#allocation2 + $0x20] sm:$0xff]
    %v223 = vld [vmem:[#allocation2 + $0x28] sm:$0xff]
    %v224 = vld [vmem:[#allocation2 + $0x30] sm:$0xff]
    %v225 = vld [vmem:[#allocation2 + $0x38] sm:$0xff]
    %v226 = vld [vmem:[#allocation4] sm:$0xf]
    %v227 = vld [vmem:[#allocation4 + $0x4] sm:$0xf]
    %v228 = vld [vmem:[#allocation4 + $0x8] sm:$0xf]
    %v229 = vld [vmem:[#allocation4 + $0xc] sm:$0xf]
    %v230 = vld [vmem:[#allocation4 + $0x10] sm:$0xf]
    %v231 = vld [vmem:[#allocation4 + $0x14] sm:$0xf]
    %v232 = vld [vmem:[#allocation4 + $0x18] sm:$0xf]
    %v233 = vld [vmem:[#allocation4 + $0x1c] sm:$0xf]
    %v234 = vld [vmem:[#allocation4 + $0x20] sm:$0xf]
    %v235 = vld [vmem:[#allocation4 + $0x24] sm:$0xf]
    %v236 = vld [vmem:[#allocation4 + $0x28] sm:$0xf]
    %v237 = vld [vmem:[#allocation4 + $0x2c] sm:$0xf]
    %v238 = vld [vmem:[#allocation4 + $0x30] sm:$0xf]
    %v239 = vld [vmem:[#allocation4 + $0x34] sm:$0xf]
    %v240 = vld [vmem:[#allocation4 + $0x38] sm:$0xf]
    %v241 = vld [vmem:[#allocation4 + $0x3c] sm:$0xf]
    %v242 = vpack.c.bf16 %v219, %v218
    %v243 = vpack.c.bf16 %v221, %v220
    %v244 = vpack.c.bf16 %v223, %v222
    %v245 = vpack.c.bf16 %v225, %v224
    %v262 = vunpack.c.l.b16 %v226
    %v263 = vunpack.c.l.b16 %v227
    %v264 = vunpack.c.l.b16 %v228
    %v265 = vunpack.c.l.b16 %v229
    %v266 = vunpack.c.l.b16 %v230
    %v267 = vunpack.c.l.b16 %v231
    %v268 = vunpack.c.l.b16 %v232
    %v269 = vunpack.c.l.b16 %v233
    %v270 = vunpack.c.l.b16 %v234
    %v271 = vunpack.c.l.b16 %v235
    %v272 = vunpack.c.l.b16 %v236
    %v273 = vunpack.c.l.b16 %v237
    %v274 = vunpack.c.l.b16 %v238
    %v275 = vunpack.c.l.b16 %v239
    %v276 = vunpack.c.l.b16 %v240
    %v277 = vunpack.c.l.b16 %v241
    %v278 = vpack.c.b16 %v263, %v262
    %v279 = vpack.c.b16 %v265, %v264
    %v280 = vpack.c.b16 %v267, %v266
    %v281 = vpack.c.b16 %v269, %v268
    %v282 = vpack.c.b16 %v271, %v270
    %v283 = vpack.c.b16 %v273, %v272
    %v284 = vpack.c.b16 %v275, %v274
    %v285 = vpack.c.b16 %v277, %v276
    %vm286 = vcmask 523264
    %v288 = vsel %vm286, %v278, 0
    %v291 = vsel %vm286, %v279, 0
    %v294 = vsel %vm286, %v280, 0
    %v297 = vsel %vm286, %v281, 0
    %v300 = vsel %vm286, %v282, 0
    %v303 = vsel %vm286, %v283, 0
    %v306 = vsel %vm286, %v284, 0
    %v309 = vsel %vm286, %v285, 0
    %311 = vmatprep.subr.bf16.mxu0 0
    %312 = vmatpush1.bf16.msra.mxu0 %v242
    %313 = vmatprep.subr.bf16.mxu0 0
    %314 = vmatpush1.bf16.msra.mxu0 %v243
    %315 = vmatprep.subr.bf16.mxu0 0
    %316 = vmatpush1.bf16.msra.mxu0 %v244
    %317 = vmatprep.subr.bf16.mxu0 0
    %318 = vmatpush1.bf16.msra.mxu0 %v245
    %319 = vmatprep.subr.bf16.mxu0 0
    %320 = vmatpush1.bf16.msra.mxu0 0
    %321 = vmatprep.subr.bf16.mxu0 0
    %322 = vmatpush1.bf16.msra.mxu0 0
    %323 = vmatprep.subr.bf16.mxu0 0
    %324 = vmatpush1.bf16.msra.mxu0 0
    %325 = vmatprep.subr.bf16.mxu0 0
    %326 = vmatpush1.bf16.msra.mxu0 0
    %327 = vmatprep.subr.bf16.mxu0 0
    %328 = vmatpush1.bf16.msra.mxu0 0
    %329 = vmatprep.subr.bf16.mxu0 0
    %330 = vmatpush1.bf16.msra.mxu0 0
    %331 = vmatprep.subr.bf16.mxu0 0
    %332 = vmatpush1.bf16.msra.mxu0 0
    %333 = vmatprep.subr.bf16.mxu0 0
    %334 = vmatpush1.bf16.msra.mxu0 0
    %335 = vmatprep.subr.bf16.mxu0 0
    %336 = vmatpush1.bf16.msra.mxu0 0
    %337 = vmatprep.subr.bf16.mxu0 0
    %338 = vmatpush1.bf16.msra.mxu0 0
    %339 = vmatprep.subr.bf16.mxu0 0
    %340 = vmatpush1.bf16.msra.mxu0 0
    %341 = vmatprep.subr.bf16.mxu0 0
    %342 = vmatpush1.bf16.msra.mxu0 0
    %343 = vmatprep.mubr.bf16.mxu0 0
    %344 = vmatmul.mubr.bf16.gmra.mrb[0].mxu0 %v288
    %v345 = vpop.f32.mrb[0].mxu0
    %v346 = vadd.f32 0.0, %v345
    %v347 = vpop.f32.mrb[0].mxu0
    %v348 = vpop.f32.mrb[0].mxu0
    %v349 = vadd.f32 0.0, %v348
    %v350 = vpop.f32.mrb[0].mxu0
    %351 = vmatprep.mubr.bf16.mxu0 0
    %352 = vmatmul.mubr.bf16.gmra.mrb[0].mxu0 %v291
    %v353 = vpop.f32.mrb[0].mxu0
    %v354 = vadd.f32 0.0, %v353
    %v355 = vpop.f32.mrb[0].mxu0
    %v356 = vpop.f32.mrb[0].mxu0
    %v357 = vadd.f32 0.0, %v356
    %v358 = vpop.f32.mrb[0].mxu0
    %359 = vmatprep.mubr.bf16.mxu0 0
    %360 = vmatmul.mubr.bf16.gmra.mrb[0].mxu0 %v294
    %v361 = vpop.f32.mrb[0].mxu0
    %v362 = vadd.f32 0.0, %v361
    %v363 = vpop.f32.mrb[0].mxu0
    %v364 = vpop.f32.mrb[0].mxu0
    %v365 = vadd.f32 0.0, %v364
    %v366 = vpop.f32.mrb[0].mxu0
    %367 = vmatprep.mubr.bf16.mxu0 0
    %368 = vmatmul.mubr.bf16.gmra.mrb[0].mxu0 %v297
    %v369 = vpop.f32.mrb[0].mxu0
    %v370 = vadd.f32 0.0, %v369
    %v371 = vpop.f32.mrb[0].mxu0
    %v372 = vpop.f32.mrb[0].mxu0
    %v373 = vadd.f32 0.0, %v372
    %v374 = vpop.f32.mrb[0].mxu0
    %375 = vmatprep.mubr.bf16.mxu0 0
    %376 = vmatmul.mubr.bf16.gmra.mrb[0].mxu0 %v300
    %v377 = vpop.f32.mrb[0].mxu0
    %v378 = vadd.f32 0.0, %v377
    %v379 = vpop.f32.mrb[0].mxu0
    %v380 = vpop.f32.mrb[0].mxu0
    %v381 = vadd.f32 0.0, %v380
    %v382 = vpop.f32.mrb[0].mxu0
    %383 = vmatprep.mubr.bf16.mxu0 0
    %384 = vmatmul.mubr.bf16.gmra.mrb[0].mxu0 %v303
    %v385 = vpop.f32.mrb[0].mxu0
    %v386 = vadd.f32 0.0, %v385
    %v387 = vpop.f32.mrb[0].mxu0
    %v388 = vpop.f32.mrb[0].mxu0
    %v389 = vadd.f32 0.0, %v388
    %v390 = vpop.f32.mrb[0].mxu0
    %391 = vmatprep.mubr.bf16.mxu0 0
    %392 = vmatmul.mubr.bf16.gmra.mrb[0].mxu0 %v306
    %v393 = vpop.f32.mrb[0].mxu0
    %v394 = vadd.f32 0.0, %v393
    %v395 = vpop.f32.mrb[0].mxu0
    %v396 = vpop.f32.mrb[0].mxu0
    %v397 = vadd.f32 0.0, %v396
    %v398 = vpop.f32.mrb[0].mxu0
    %399 = vmatprep.mubr.bf16.mxu0 0
    %400 = vmatmul.mubr.bf16.gmra.mrb[0].mxu0 %v309
    %v401 = vpop.f32.mrb[0].mxu0
    %v402 = vadd.f32 0.0, %v401
    %v403 = vpop.f32.mrb[0].mxu0
    %v404 = vpop.f32.mrb[0].mxu0
    %v405 = vadd.f32 0.0, %v404
    %v406 = vpop.f32.mrb[0].mxu0
    %407 = vdwg.mxu0
    %412 = vrot.lane.b32.xlu0 %v362, 32
    %v413 = vpop.permute.xlu0 %412
    %414 = vrot.lane.b32.xlu0 %v365, 32
    %v415 = vpop.permute.xlu0 %414
    %416 = vrot.lane.b32.xlu0 %v370, 32
    %v417 = vpop.permute.xlu0 %416
    %418 = vrot.lane.b32.xlu0 %v373, 32
    %v419 = vpop.permute.xlu0 %418
    %428 = vrot.lane.b32.xlu0 %v378, 64
    %v429 = vpop.permute.xlu0 %428
    %430 = vrot.lane.b32.xlu0 %v381, 64
    %v431 = vpop.permute.xlu0 %430
    %432 = vrot.lane.b32.xlu0 %v386, 64
    %v433 = vpop.permute.xlu0 %432
    %434 = vrot.lane.b32.xlu0 %v389, 64
    %v435 = vpop.permute.xlu0 %434
    %444 = vrot.lane.b32.xlu0 %v394, 96
    %v445 = vpop.permute.xlu0 %444
    %446 = vrot.lane.b32.xlu0 %v397, 96
    %v447 = vpop.permute.xlu0 %446
    %448 = vrot.lane.b32.xlu0 %v402, 96
    %v449 = vpop.permute.xlu0 %448
    %450 = vrot.lane.b32.xlu0 %v405, 96
    %v451 = vpop.permute.xlu0 %450
    %vm456 = vcmask 261120
    %v457 = vsel %vm456, %v346, %v413
    %v458 = vsel %vm456, %v349, %v415
    %v459 = vsel %vm456, %v354, %v417
    %v460 = vsel %vm456, %v357, %v419
    %v461 = vsel %vm286, %v457, %v429
    %v462 = vsel %vm286, %v458, %v431
    %v463 = vsel %vm286, %v459, %v433
    %v464 = vsel %vm286, %v460, %v435
    %vm465 = vcmask 785408
    %v466 = vsel %vm465, %v461, %v445
    %v467 = vsel %vm465, %v462, %v447
    %v468 = vsel %vm465, %v463, %v449
    %v469 = vsel %vm465, %v464, %v451
    %v470 = vpack.c.bf16 %v467, %v466
    %v471 = vpack.c.bf16 %v469, %v468
    %v472 = vld [vmem:[%s2] sm:$0xf]
    %v473 = vld [vmem:[%s2 + $0x4] sm:$0xf]
    %v474 = vld [vmem:[%s2 + $0x8] sm:$0xf]
    %v475 = vld [vmem:[%s2 + $0xc] sm:$0xf]
    %v476 = vld [vmem:[%s2 + $0x10] sm:$0xf]
    %v477 = vld [vmem:[%s2 + $0x14] sm:$0xf]
    %v478 = vld [vmem:[%s2 + $0x18] sm:$0xf]
    %v479 = vld [vmem:[%s2 + $0x1c] sm:$0xf]
    %v480 = vld [vmem:[%s2 + $0x20] sm:$0xf]
    %v481 = vld [vmem:[%s2 + $0x24] sm:$0xf]
    %v482 = vld [vmem:[%s2 + $0x28] sm:$0xf]
    %v483 = vld [vmem:[%s2 + $0x2c] sm:$0xf]
    %v484 = vld [vmem:[%s2 + $0x30] sm:$0xf]
    %v485 = vld [vmem:[%s2 + $0x34] sm:$0xf]
    %v486 = vld [vmem:[%s2 + $0x38] sm:$0xf]
    %v487 = vld [vmem:[%s2 + $0x3c] sm:$0xf]
    %v504 = vunpack.c.l.b16 %v472
    %v505 = vunpack.c.l.b16 %v473
    %v506 = vunpack.c.l.b16 %v474
    %v507 = vunpack.c.l.b16 %v475
    %v508 = vunpack.c.l.b16 %v476
    %v509 = vunpack.c.l.b16 %v477
    %v510 = vunpack.c.l.b16 %v478
    %v511 = vunpack.c.l.b16 %v479
    %v512 = vunpack.c.l.b16 %v480
    %v513 = vunpack.c.l.b16 %v481
    %v514 = vunpack.c.l.b16 %v482
    %v515 = vunpack.c.l.b16 %v483
    %v516 = vunpack.c.l.b16 %v484
    %v517 = vunpack.c.l.b16 %v485
    %v518 = vunpack.c.l.b16 %v486
    %v519 = vunpack.c.l.b16 %v487
    %v520 = vpack.c.b16 %v505, %v504
    %v521 = vpack.c.b16 %v507, %v506
    %v522 = vpack.c.b16 %v509, %v508
    %v523 = vpack.c.b16 %v511, %v510
    %v524 = vpack.c.b16 %v513, %v512
    %v525 = vpack.c.b16 %v515, %v514
    %v526 = vpack.c.b16 %v517, %v516
    %v527 = vpack.c.b16 %v519, %v518
    %536 = vmatprep.subr.bf16.mxu0 0
    %537 = vmatpush1.bf16.msra.mxu0 %v520
    %538 = vmatprep.subr.bf16.mxu0 0
    %539 = vmatpush1.bf16.msra.mxu0 %v521
    %540 = vmatprep.subr.bf16.mxu0 0
    %541 = vmatpush1.bf16.msra.mxu0 %v522
    %542 = vmatprep.subr.bf16.mxu0 0
    %543 = vmatpush1.bf16.msra.mxu0 %v523
    %544 = vmatprep.subr.bf16.mxu0 0
    %545 = vmatpush1.bf16.msra.mxu0 %v524
    %546 = vmatprep.subr.bf16.mxu0 0
    %547 = vmatpush1.bf16.msra.mxu0 %v525
    %548 = vmatprep.subr.bf16.mxu0 0
    %549 = vmatpush1.bf16.msra.mxu0 %v526
    %550 = vmatprep.subr.bf16.mxu0 0
    %551 = vmatpush1.bf16.msra.mxu0 %v527
    %552 = vmatprep.subr.bf16.mxu0 0
    %553 = vmatpush1.bf16.msra.mxu0 0
    %554 = vmatprep.subr.bf16.mxu0 0
    %555 = vmatpush1.bf16.msra.mxu0 0
    %556 = vmatprep.subr.bf16.mxu0 0
    %557 = vmatpush1.bf16.msra.mxu0 0
    %558 = vmatprep.subr.bf16.mxu0 0
    %559 = vmatpush1.bf16.msra.mxu0 0
    %560 = vmatprep.subr.bf16.mxu0 0
    %561 = vmatpush1.bf16.msra.mxu0 0
    %562 = vmatprep.subr.bf16.mxu0 0
    %563 = vmatpush1.bf16.msra.mxu0 0
    %564 = vmatprep.subr.bf16.mxu0 0
    %565 = vmatpush1.bf16.msra.mxu0 0
    %566 = vmatprep.subr.bf16.mxu0 0
    %567 = vmatpush1.bf16.msra.mxu0 0
    %568 = vmatprep.mubr.bf16.mxu0 0
    %569 = vmatmul.mubr.bf16.gmra.mrb[0].mxu0 %v470
    %v570 = vpop.f32.mrb[0].mxu0
    %v571 = vadd.f32 0.0, %v570
    %v572 = vpop.f32.mrb[0].mxu0
    %v573 = vpop.f32.mrb[0].mxu0
    %v574 = vadd.f32 0.0, %v573
    %v575 = vpop.f32.mrb[0].mxu0
    %576 = vmatprep.mubr.bf16.mxu0 0
    %577 = vmatmul.mubr.bf16.gmra.mrb[0].mxu0 %v471
    %v578 = vpop.f32.mrb[0].mxu0
    %v579 = vadd.f32 0.0, %v578
    %v580 = vpop.f32.mrb[0].mxu0
    %v581 = vpop.f32.mrb[0].mxu0
    %v582 = vadd.f32 0.0, %v581
    %v583 = vpop.f32.mrb[0].mxu0
    %584 = vdwg.mxu0
    %vm585 = vcmp.ge.f32.partialorder %v571, 0.0
    %vm586 = vcmp.ge.f32.partialorder %v574, 0.0
    %vm587 = vcmp.ge.f32.partialorder %v579, 0.0
    %vm588 = vcmp.ge.f32.partialorder %v582, 0.0
    %v589 = vmul.f32 %v571, 0.2
    %v590 = vmul.f32 %v574, 0.2
    %v591 = vmul.f32 %v579, 0.2
    %v592 = vmul.f32 %v582, 0.2
    %v593 = vsel %vm585, %v571, %v589
    %v594 = vsel %vm586, %v574, %v590
    %v595 = vsel %vm587, %v579, %v591
    %v596 = vsel %vm588, %v582, %v592
    %v597 = vld [vmem:[#allocation6] sm:$0xf]
    %v598 = vld [vmem:[#allocation6 + $0x4] sm:$0xf]
    %v599 = vld [vmem:[#allocation6 + $0x8] sm:$0xf]
    %v600 = vld [vmem:[#allocation6 + $0xc] sm:$0xf]
    %v601 = vld [vmem:[#allocation6 + $0x10] sm:$0xf]
    %v602 = vld [vmem:[#allocation6 + $0x14] sm:$0xf]
    %v603 = vld [vmem:[#allocation6 + $0x18] sm:$0xf]
    %v604 = vld [vmem:[#allocation6 + $0x1c] sm:$0xf]
    %v605 = vpack.c.bf16 %v594, %v593
    %v606 = vpack.c.bf16 %v596, %v595
    %v615 = vunpack.c.l.b16 %v597
    %v616 = vunpack.c.l.b16 %v598
    %v617 = vunpack.c.l.b16 %v599
    %v618 = vunpack.c.l.b16 %v600
    %v619 = vunpack.c.l.b16 %v601
    %v620 = vunpack.c.l.b16 %v602
    %v621 = vunpack.c.l.b16 %v603
    %v622 = vunpack.c.l.b16 %v604
    %v623 = vpack.c.b16 %v616, %v615
    %v624 = vpack.c.b16 %v618, %v617
    %v625 = vpack.c.b16 %v620, %v619
    %v626 = vpack.c.b16 %v622, %v621
    %v628 = vsel %vm456, %v623, 0
    %v631 = vsel %vm456, %v624, 0
    %v634 = vsel %vm456, %v625, 0
    %v637 = vsel %vm456, %v626, 0
    %639 = vmatprep.subr.bf16.mxu0 0
    %640 = vmatpush1.bf16.msra.mxu0 %v605
    %641 = vmatprep.subr.bf16.mxu0 0
    %642 = vmatpush1.bf16.msra.mxu0 %v606
    %643 = vmatprep.subr.bf16.mxu0 0
    %644 = vmatpush1.bf16.msra.mxu0 0
    %645 = vmatprep.subr.bf16.mxu0 0
    %646 = vmatpush1.bf16.msra.mxu0 0
    %647 = vmatprep.subr.bf16.mxu0 0
    %648 = vmatpush1.bf16.msra.mxu0 0
    %649 = vmatprep.subr.bf16.mxu0 0
    %650 = vmatpush1.bf16.msra.mxu0 0
    %651 = vmatprep.subr.bf16.mxu0 0
    %652 = vmatpush1.bf16.msra.mxu0 0
    %653 = vmatprep.subr.bf16.mxu0 0
    %654 = vmatpush1.bf16.msra.mxu0 0
    %655 = vmatprep.subr.bf16.mxu0 0
    %656 = vmatpush1.bf16.msra.mxu0 0
    %657 = vmatprep.subr.bf16.mxu0 0
    %658 = vmatpush1.bf16.msra.mxu0 0
    %659 = vmatprep.subr.bf16.mxu0 0
    %660 = vmatpush1.bf16.msra.mxu0 0
    %661 = vmatprep.subr.bf16.mxu0 0
    %662 = vmatpush1.bf16.msra.mxu0 0
    %663 = vmatprep.subr.bf16.mxu0 0
    %664 = vmatpush1.bf16.msra.mxu0 0
    %665 = vmatprep.subr.bf16.mxu0 0
    %666 = vmatpush1.bf16.msra.mxu0 0
    %667 = vmatprep.subr.bf16.mxu0 0
    %668 = vmatpush1.bf16.msra.mxu0 0
    %669 = vmatprep.subr.bf16.mxu0 0
    %670 = vmatpush1.bf16.msra.mxu0 0
    %671 = vmatprep.mubr.bf16.mxu0 0
    %672 = vmatmul.mubr.bf16.gmra.mrb[0].mxu0 %v628
    %v673 = vpop.f32.mrb[0].mxu0
    %v674 = vadd.f32 0.0, %v673
    %v675 = vpop.f32.mrb[0].mxu0
    %v676 = vpop.f32.mrb[0].mxu0
    %v677 = vadd.f32 0.0, %v676
    %v678 = vpop.f32.mrb[0].mxu0
    %679 = vmatprep.mubr.bf16.mxu0 0
    %680 = vmatmul.mubr.bf16.gmra.mrb[0].mxu0 %v631
    %v681 = vpop.f32.mrb[0].mxu0
    %v682 = vadd.f32 0.0, %v681
    %v683 = vpop.f32.mrb[0].mxu0
    %v684 = vpop.f32.mrb[0].mxu0
    %v685 = vadd.f32 0.0, %v684
    %v686 = vpop.f32.mrb[0].mxu0
    %687 = vmatprep.mubr.bf16.mxu0 0
    %688 = vmatmul.mubr.bf16.gmra.mrb[0].mxu0 %v634
    %v689 = vpop.f32.mrb[0].mxu0
    %v690 = vadd.f32 0.0, %v689
    %v691 = vpop.f32.mrb[0].mxu0
    %v692 = vpop.f32.mrb[0].mxu0
    %v693 = vadd.f32 0.0, %v692
    %v694 = vpop.f32.mrb[0].mxu0
    %695 = vmatprep.mubr.bf16.mxu0 0
    %696 = vmatmul.mubr.bf16.gmra.mrb[0].mxu0 %v637
    %v697 = vpop.f32.mrb[0].mxu0
    %v698 = vadd.f32 0.0, %v697
    %v699 = vpop.f32.mrb[0].mxu0
    %v700 = vpop.f32.mrb[0].mxu0
    %v701 = vadd.f32 0.0, %v700
    %v702 = vpop.f32.mrb[0].mxu0
    %703 = vdwg.mxu0
    %v704 = vpack.c.bf16 %v677, %v674
    %v705 = vpack.c.bf16 %v685, %v682
    %v706 = vpack.c.bf16 %v693, %v690
    %v707 = vpack.c.bf16 %v701, %v698
    %v708 = vld [vmem:[#allocation7] sm:$0xf]
    %v709 = vld [vmem:[#allocation7 + $0x4] sm:$0xf]
    %v710 = vld [vmem:[#allocation7 + $0x8] sm:$0xf]
    %v711 = vld [vmem:[#allocation7 + $0xc] sm:$0xf]
    %v712 = vld [vmem:[#allocation7 + $0x10] sm:$0xf]
    %v713 = vld [vmem:[#allocation7 + $0x14] sm:$0xf]
    %v714 = vld [vmem:[#allocation7 + $0x18] sm:$0xf]
    %v715 = vld [vmem:[#allocation7 + $0x1c] sm:$0xf]
    %v716 = vld [vmem:[#allocation7 + $0x20] sm:$0xf]
    %v717 = vld [vmem:[#allocation7 + $0x24] sm:$0xf]
    %v718 = vld [vmem:[#allocation7 + $0x28] sm:$0xf]
    %v719 = vld [vmem:[#allocation7 + $0x2c] sm:$0xf]
    %v720 = vld [vmem:[#allocation7 + $0x30] sm:$0xf]
    %v721 = vld [vmem:[#allocation7 + $0x34] sm:$0xf]
    %v722 = vld [vmem:[#allocation7 + $0x38] sm:$0xf]
    %v723 = vld [vmem:[#allocation7 + $0x3c] sm:$0xf]
    %v724 = vld [vmem:[#allocation7 + $0x40] sm:$0xf]
    %v725 = vld [vmem:[#allocation7 + $0x44] sm:$0xf]
    %v726 = vld [vmem:[#allocation7 + $0x48] sm:$0xf]
    %v727 = vld [vmem:[#allocation7 + $0x4c] sm:$0xf]
    %v728 = vld [vmem:[#allocation7 + $0x50] sm:$0xf]
    %v729 = vld [vmem:[#allocation7 + $0x54] sm:$0xf]
    %v730 = vld [vmem:[#allocation7 + $0x58] sm:$0xf]
    %v731 = vld [vmem:[#allocation7 + $0x5c] sm:$0xf]
    %v732 = vld [vmem:[#allocation7 + $0x60] sm:$0xf]
    %v733 = vld [vmem:[#allocation7 + $0x64] sm:$0xf]
    %v734 = vld [vmem:[#allocation7 + $0x68] sm:$0xf]
    %v735 = vld [vmem:[#allocation7 + $0x6c] sm:$0xf]
    %v736 = vld [vmem:[#allocation7 + $0x70] sm:$0xf]
    %v737 = vld [vmem:[#allocation7 + $0x74] sm:$0xf]
    %v738 = vld [vmem:[#allocation7 + $0x78] sm:$0xf]
    %v739 = vld [vmem:[#allocation7 + $0x7c] sm:$0xf]
    %v740 = vld [vmem:[#allocation7 + $0x80] sm:$0xf]
    %v741 = vld [vmem:[#allocation7 + $0x84] sm:$0xf]
    %v742 = vld [vmem:[#allocation7 + $0x88] sm:$0xf]
    %v743 = vld [vmem:[#allocation7 + $0x8c] sm:$0xf]
    %v744 = vld [vmem:[#allocation7 + $0x90] sm:$0xf]
    %v745 = vld [vmem:[#allocation7 + $0x94] sm:$0xf]
    %v746 = vld [vmem:[#allocation7 + $0x98] sm:$0xf]
    %v747 = vld [vmem:[#allocation7 + $0x9c] sm:$0xf]
    %v748 = vld [vmem:[#allocation7 + $0xa0] sm:$0xf]
    %v749 = vld [vmem:[#allocation7 + $0xa4] sm:$0xf]
    %v750 = vld [vmem:[#allocation7 + $0xa8] sm:$0xf]
    %v751 = vld [vmem:[#allocation7 + $0xac] sm:$0xf]
    %v752 = vld [vmem:[#allocation7 + $0xb0] sm:$0xf]
    %v753 = vld [vmem:[#allocation7 + $0xb4] sm:$0xf]
    %v754 = vld [vmem:[#allocation7 + $0xb8] sm:$0xf]
    %v755 = vld [vmem:[#allocation7 + $0xbc] sm:$0xf]
    %v756 = vld [vmem:[#allocation7 + $0xc0] sm:$0xf]
    %v757 = vld [vmem:[#allocation7 + $0xc4] sm:$0xf]
    %v758 = vld [vmem:[#allocation7 + $0xc8] sm:$0xf]
    %v759 = vld [vmem:[#allocation7 + $0xcc] sm:$0xf]
    %v760 = vld [vmem:[#allocation7 + $0xd0] sm:$0xf]
    %v761 = vld [vmem:[#allocation7 + $0xd4] sm:$0xf]
    %v762 = vld [vmem:[#allocation7 + $0xd8] sm:$0xf]
    %v763 = vld [vmem:[#allocation7 + $0xdc] sm:$0xf]
    %v764 = vld [vmem:[#allocation7 + $0xe0] sm:$0xf]
    %v765 = vld [vmem:[#allocation7 + $0xe4] sm:$0xf]
    %v766 = vld [vmem:[#allocation7 + $0xe8] sm:$0xf]
    %v767 = vld [vmem:[#allocation7 + $0xec] sm:$0xf]
    %v768 = vld [vmem:[#allocation7 + $0xf0] sm:$0xf]
    %v769 = vld [vmem:[#allocation7 + $0xf4] sm:$0xf]
    %v770 = vld [vmem:[#allocation7 + $0xf8] sm:$0xf]
    %v771 = vld [vmem:[#allocation7 + $0xfc] sm:$0xf]
    %v836 = vunpack.c.l.b16 %v708
    %v837 = vunpack.c.l.b16 %v709
    %v838 = vunpack.c.l.b16 %v710
    %v839 = vunpack.c.l.b16 %v711
    %v840 = vunpack.c.l.b16 %v712
    %v841 = vunpack.c.l.b16 %v713
    %v842 = vunpack.c.l.b16 %v714
    %v843 = vunpack.c.l.b16 %v715
    %v844 = vunpack.c.l.b16 %v716
    %v845 = vunpack.c.l.b16 %v717
    %v846 = vunpack.c.l.b16 %v718
    %v847 = vunpack.c.l.b16 %v719
    %v848 = vunpack.c.l.b16 %v720
    %v849 = vunpack.c.l.b16 %v721
    %v850 = vunpack.c.l.b16 %v722
    %v851 = vunpack.c.l.b16 %v723
    %v852 = vunpack.c.l.b16 %v724
    %v853 = vunpack.c.l.b16 %v725
    %v854 = vunpack.c.l.b16 %v726
    %v855 = vunpack.c.l.b16 %v727
    %v856 = vunpack.c.l.b16 %v728
    %v857 = vunpack.c.l.b16 %v729
    %v858 = vunpack.c.l.b16 %v730
    %v859 = vunpack.c.l.b16 %v731
    %v860 = vunpack.c.l.b16 %v732
    %v861 = vunpack.c.l.b16 %v733
    %v862 = vunpack.c.l.b16 %v734
    %v863 = vunpack.c.l.b16 %v735
    %v864 = vunpack.c.l.b16 %v736
    %v865 = vunpack.c.l.b16 %v737
    %v866 = vunpack.c.l.b16 %v738
    %v867 = vunpack.c.l.b16 %v739
    %v868 = vunpack.c.l.b16 %v740
    %v869 = vunpack.c.l.b16 %v741
    %v870 = vunpack.c.l.b16 %v742
    %v871 = vunpack.c.l.b16 %v743
    %v872 = vunpack.c.l.b16 %v744
    %v873 = vunpack.c.l.b16 %v745
    %v874 = vunpack.c.l.b16 %v746
    %v875 = vunpack.c.l.b16 %v747
    %v876 = vunpack.c.l.b16 %v748
    %v877 = vunpack.c.l.b16 %v749
    %v878 = vunpack.c.l.b16 %v750
    %v879 = vunpack.c.l.b16 %v751
    %v880 = vunpack.c.l.b16 %v752
    %v881 = vunpack.c.l.b16 %v753
    %v882 = vunpack.c.l.b16 %v754
    %v883 = vunpack.c.l.b16 %v755
    %v884 = vunpack.c.l.b16 %v756
    %v885 = vunpack.c.l.b16 %v757
    %v886 = vunpack.c.l.b16 %v758
    %v887 = vunpack.c.l.b16 %v759
    %v888 = vunpack.c.l.b16 %v760
    %v889 = vunpack.c.l.b16 %v761
    %v890 = vunpack.c.l.b16 %v762
    %v891 = vunpack.c.l.b16 %v763
    %v892 = vunpack.c.l.b16 %v764
    %v893 = vunpack.c.l.b16 %v765
    %v894 = vunpack.c.l.b16 %v766
    %v895 = vunpack.c.l.b16 %v767
    %v896 = vunpack.c.l.b16 %v768
    %v897 = vunpack.c.l.b16 %v769
    %v898 = vunpack.c.l.b16 %v770
    %v899 = vunpack.c.l.b16 %v771
    %v900 = vpack.c.b16 %v837, %v836
    %v901 = vpack.c.b16 %v839, %v838
    %v902 = vpack.c.b16 %v841, %v840
    %v903 = vpack.c.b16 %v843, %v842
    %v904 = vpack.c.b16 %v845, %v844
    %v905 = vpack.c.b16 %v847, %v846
    %v906 = vpack.c.b16 %v849, %v848
    %v907 = vpack.c.b16 %v851, %v850
    %v908 = vpack.c.b16 %v853, %v852
    %v909 = vpack.c.b16 %v855, %v854
    %v910 = vpack.c.b16 %v857, %v856
    %v911 = vpack.c.b16 %v859, %v858
    %v912 = vpack.c.b16 %v861, %v860
    %v913 = vpack.c.b16 %v863, %v862
    %v914 = vpack.c.b16 %v865, %v864
    %v915 = vpack.c.b16 %v867, %v866
    %v916 = vpack.c.b16 %v869, %v868
    %v917 = vpack.c.b16 %v871, %v870
    %v918 = vpack.c.b16 %v873, %v872
    %v919 = vpack.c.b16 %v875, %v874
    %v920 = vpack.c.b16 %v877, %v876
    %v921 = vpack.c.b16 %v879, %v878
    %v922 = vpack.c.b16 %v881, %v880
    %v923 = vpack.c.b16 %v883, %v882
    %v924 = vpack.c.b16 %v885, %v884
    %v925 = vpack.c.b16 %v887, %v886
    %v926 = vpack.c.b16 %v889, %v888
    %v927 = vpack.c.b16 %v891, %v890
    %v928 = vpack.c.b16 %v893, %v892
    %v929 = vpack.c.b16 %v895, %v894
    %v930 = vpack.c.b16 %v897, %v896
    %v931 = vpack.c.b16 %v899, %v898
    %964 = vmatprep.subr.bf16.mxu0 0
    %965 = vmatpush1.bf16.msra.mxu0 %v900
    %966 = vmatprep.subr.bf16.mxu0 0
    %967 = vmatpush1.bf16.msra.mxu0 %v901
    %968 = vmatprep.subr.bf16.mxu0 0
    %969 = vmatpush1.bf16.msra.mxu0 %v902
    %970 = vmatprep.subr.bf16.mxu0 0
    %971 = vmatpush1.bf16.msra.mxu0 %v903
    %972 = vmatprep.subr.bf16.mxu0 0
    %973 = vmatpush1.bf16.msra.mxu0 %v904
    %974 = vmatprep.subr.bf16.mxu0 0
    %975 = vmatpush1.bf16.msra.mxu0 %v905
    %976 = vmatprep.subr.bf16.mxu0 0
    %977 = vmatpush1.bf16.msra.mxu0 %v906
    %978 = vmatprep.subr.bf16.mxu0 0
    %979 = vmatpush1.bf16.msra.mxu0 %v907
    %980 = vmatprep.subr.bf16.mxu0 0
    %981 = vmatpush1.bf16.msra.mxu0 %v908
    %982 = vmatprep.subr.bf16.mxu0 0
    %983 = vmatpush1.bf16.msra.mxu0 %v909
    %984 = vmatprep.subr.bf16.mxu0 0
    %985 = vmatpush1.bf16.msra.mxu0 %v910
    %986 = vmatprep.subr.bf16.mxu0 0
    %987 = vmatpush1.bf16.msra.mxu0 %v911
    %988 = vmatprep.subr.bf16.mxu0 0
    %989 = vmatpush1.bf16.msra.mxu0 %v912
    %990 = vmatprep.subr.bf16.mxu0 0
    %991 = vmatpush1.bf16.msra.mxu0 %v913
    %992 = vmatprep.subr.bf16.mxu0 0
    %993 = vmatpush1.bf16.msra.mxu0 %v914
    %994 = vmatprep.subr.bf16.mxu0 0
    %995 = vmatpush1.bf16.msra.mxu0 %v915
    %996 = vmatprep.mubr.bf16.mxu0 %v705
    %997 = vmatmul.mubr.bf16.gmra.mrb[0].mxu0 %v704
    %v998 = vpop.f32.mrb[0].mxu0
    %v999 = vadd.f32 0.0, %v998
    %v1000 = vpop.f32.mrb[0].mxu0
    %v1001 = vpop.f32.mrb[0].mxu0
    %v1002 = vadd.f32 0.0, %v1001
    %v1003 = vpop.f32.mrb[0].mxu0
    %1004 = vdwg.mxu0
    %1005 = vmatprep.subr.bf16.mxu0 0
    %1006 = vmatpush1.bf16.msra.mxu0 %v916
    %1007 = vmatprep.subr.bf16.mxu0 0
    %1008 = vmatpush1.bf16.msra.mxu0 %v917
    %1009 = vmatprep.subr.bf16.mxu0 0
    %1010 = vmatpush1.bf16.msra.mxu0 %v918
    %1011 = vmatprep.subr.bf16.mxu0 0
    %1012 = vmatpush1.bf16.msra.mxu0 %v919
    %1013 = vmatprep.subr.bf16.mxu0 0
    %1014 = vmatpush1.bf16.msra.mxu0 %v920
    %1015 = vmatprep.subr.bf16.mxu0 0
    %1016 = vmatpush1.bf16.msra.mxu0 %v921
    %1017 = vmatprep.subr.bf16.mxu0 0
    %1018 = vmatpush1.bf16.msra.mxu0 %v922
    %1019 = vmatprep.subr.bf16.mxu0 0
    %1020 = vmatpush1.bf16.msra.mxu0 %v923
    %1021 = vmatprep.subr.bf16.mxu0 0
    %1022 = vmatpush1.bf16.msra.mxu0 %v924
    %1023 = vmatprep.subr.bf16.mxu0 0
    %1024 = vmatpush1.bf16.msra.mxu0 %v925
    %1025 = vmatprep.subr.bf16.mxu0 0
    %1026 = vmatpush1.bf16.msra.mxu0 %v926
    %1027 = vmatprep.subr.bf16.mxu0 0
    %1028 = vmatpush1.bf16.msra.mxu0 %v927
    %1029 = vmatprep.subr.bf16.mxu0 0
    %1030 = vmatpush1.bf16.msra.mxu0 %v928
    %1031 = vmatprep.subr.bf16.mxu0 0
    %1032 = vmatpush1.bf16.msra.mxu0 %v929
    %1033 = vmatprep.subr.bf16.mxu0 0
    %1034 = vmatpush1.bf16.msra.mxu0 %v930
    %1035 = vmatprep.subr.bf16.mxu0 0
    %1036 = vmatpush1.bf16.msra.mxu0 %v931
    %1037 = vmatprep.mubr.bf16.mxu0 %v707
    %1038 = vmatmul.mubr.bf16.gmra.mrb[0].mxu0 %v706
    %v1039 = vpop.f32.mrb[0].mxu0
    %v1040 = vadd.f32 %v999, %v1039
    %v1041 = vpop.f32.mrb[0].mxu0
    %v1042 = vpop.f32.mrb[0].mxu0
    %v1043 = vadd.f32 %v1002, %v1042
    %v1044 = vpop.f32.mrb[0].mxu0
    %1045 = vdwg.mxu0
    %v1046 = vadd.f32 %v1040, %v1043
    %v1047 = vrot.slane %v1046, 4
    %v1048 = vadd.f32 %v1046, %v1047
    %v1049 = vrot.slane %v1048, 2
    %v1050 = vadd.f32 %v1048, %v1049
    %v1051 = vrot.slane %v1050, 1
    %v1052 = vadd.f32 %v1050, %v1051
    %v1053 = vrcp.pop 16.0
    %v1054 = vmul.f32 %v1052, %v1053
    %v1055 = vmul.f32 %v1040, %v1040
    %v1056 = vmul.f32 %v1043, %v1043
    %v1057 = vadd.f32 %v1055, %v1056
    %v1058 = vrot.slane %v1057, 4
    %v1059 = vadd.f32 %v1057, %v1058
    %v1060 = vrot.slane %v1059, 2
    %v1061 = vadd.f32 %v1059, %v1060
    %v1062 = vrot.slane %v1061, 1
    %v1063 = vadd.f32 %v1061, %v1062
    %v1064 = vmul.f32 %v1063, %v1053
    %vm1065 = vcmask 1040384
    %v1066 = vsel %vm1065, %v1054, %v1064
    %v1067 = vld [vmem:[#allocation10] sm:$0xff]
    %v1068 = vld [vmem:[#allocation10 + $0x8] sm:$0xff]
    %v1069 = vld [vmem:[#allocation10 + $0x10] sm:$0xff]
    %v1070 = vld [vmem:[#allocation10 + $0x18] sm:$0xff]
    %v1071 = vld [vmem:[#allocation10 + $0x20] sm:$0xff]
    %v1072 = vld [vmem:[#allocation10 + $0x28] sm:$0xff]
    %v1073 = vld [vmem:[#allocation10 + $0x30] sm:$0xff]
    %v1074 = vld [vmem:[#allocation10 + $0x38] sm:$0xff]
    %v1075 = vld [vmem:[#allocation10 + $0x40] sm:$0xff]
    %v1076 = vld [vmem:[#allocation10 + $0x48] sm:$0xff]
    %v1077 = vld [vmem:[#allocation10 + $0x50] sm:$0xff]
    %v1078 = vld [vmem:[#allocation10 + $0x58] sm:$0xff]
    %v1079 = vld [vmem:[#allocation10 + $0x60] sm:$0xff]
    %v1080 = vld [vmem:[#allocation10 + $0x68] sm:$0xff]
    %v1081 = vld [vmem:[#allocation10 + $0x70] sm:$0xff]
    %v1082 = vld [vmem:[#allocation10 + $0x78] sm:$0xff]
    %1083 = vmatprep.subr.mxu0 0.0
    %1084 = vmatpush1.msra.mxu0 %v1067
    %1085 = vmatprep.subr.mxu0 0.0
    %1086 = vmatpush1.msra.mxu0 %v1068
    %1087 = vmatprep.subr.mxu0 0.0
    %1088 = vmatpush1.msra.mxu0 %v1069
    %1089 = vmatprep.subr.mxu0 0.0
    %1090 = vmatpush1.msra.mxu0 %v1070
    %1091 = vmatprep.subr.mxu0 0.0
    %1092 = vmatpush1.msra.mxu0 %v1071
    %1093 = vmatprep.subr.mxu0 0.0
    %1094 = vmatpush1.msra.mxu0 %v1072
    %1095 = vmatprep.subr.mxu0 0.0
    %1096 = vmatpush1.msra.mxu0 %v1073
    %1097 = vmatprep.subr.mxu0 0.0
    %1098 = vmatpush1.msra.mxu0 %v1074
    %1099 = vmatprep.subr.mxu0 0.0
    %1100 = vmatpush1.msra.mxu0 %v1075
    %1101 = vmatprep.subr.mxu0 0.0
    %1102 = vmatpush1.msra.mxu0 %v1076
    %1103 = vmatprep.subr.mxu0 0.0
    %1104 = vmatpush1.msra.mxu0 %v1077
    %1105 = vmatprep.subr.mxu0 0.0
    %1106 = vmatpush1.msra.mxu0 %v1078
    %1107 = vmatprep.subr.mxu0 0.0
    %1108 = vmatpush1.msra.mxu0 %v1079
    %1109 = vmatprep.subr.mxu0 0.0
    %1110 = vmatpush1.msra.mxu0 %v1080
    %1111 = vmatprep.subr.mxu0 0.0
    %1112 = vmatpush1.msra.mxu0 %v1081
    %1113 = vmatprep.subr.mxu0 0.0
    %1114 = vmatpush1.msra.mxu0 %v1082
    %1115 = vmatprep.subr.mxu0 0.0
    %1116 = vmatpush1.msra.mxu0 0.0
    %1117 = vmatprep.subr.mxu0 0.0
    %1118 = vmatpush1.msra.mxu0 0.0
    %1119 = vmatprep.subr.mxu0 0.0
    %1120 = vmatpush1.msra.mxu0 0.0
    %1121 = vmatprep.subr.mxu0 0.0
    %1122 = vmatpush1.msra.mxu0 0.0
    %1123 = vmatprep.subr.mxu0 0.0
    %1124 = vmatpush1.msra.mxu0 0.0
    %1125 = vmatprep.subr.mxu0 0.0
    %1126 = vmatpush1.msra.mxu0 0.0
    %1127 = vmatprep.subr.mxu0 0.0
    %1128 = vmatpush1.msra.mxu0 0.0
    %1129 = vmatprep.subr.mxu0 0.0
    %1130 = vmatpush1.msra.mxu0 0.0
    %1131 = vmatprep.subr.mxu0 0.0
    %1132 = vmatpush1.msra.mxu0 0.0
    %1133 = vmatprep.subr.mxu0 0.0
    %1134 = vmatpush1.msra.mxu0 0.0
    %1135 = vmatprep.subr.mxu0 0.0
    %1136 = vmatpush1.msra.mxu0 0.0
    %1137 = vmatprep.subr.mxu0 0.0
    %1138 = vmatpush1.msra.mxu0 0.0
    %1139 = vmatprep.subr.mxu0 0.0
    %1140 = vmatpush1.msra.mxu0 0.0
    %1141 = vmatprep.subr.mxu0 0.0
    %1142 = vmatpush1.msra.mxu0 0.0
    %1143 = vmatprep.subr.mxu0 0.0
    %1144 = vmatpush1.msra.mxu0 0.0
    %1145 = vmatprep.subr.mxu0 0.0
    %1146 = vmatpush1.msra.mxu0 0.0
    %1147 = vmatprep.mubr.f32.mxu0 0.0
    %1148 = vmatmul.mubr.f32.gmra.mrb[0].mxu0 %v1066
    %v1149 = vpop.f32.mrb[0].mxu0
    %v1150 = vadd.f32 0.0, %v1149
    %v1151 = vpop.f32.mrb[0].mxu0
    %1152 = vdwg.mxu0
    %v1153 = vmul.f32 %v1150, %v1150
    %v1155 = vrot.slane %v1153, 7
    %v1157 = vsub.f32 %v1150, %v1155
    %v1158 = vld [vmem:[#allocation9] sm:$0x1]
    %v1159 = vadd.f32 %v1157, 1e-05
    %v1160 = vrsqrt.pop %v1159
    %v1163 = vunpack.c.l.s4 1966171168
    %v1164 = vunpack.c.0.s8 %v1163
    %v1165 = vlaneseq
    %v1166 = vshrl.u32 %v1165, 7
    %v1167 = vsub.s32 %v1164, %v1166
    %v1168 = vrot.slane %v1160, %v1167
    %v1169 = vcombine.high %v1168, %v1168
    %v1171 = vunpack.c.l.s4 1966171168
    %v1172 = vunpack.c.0.s8 %v1171
    %v1173 = vlaneseq
    %v1174 = vshrl.u32 %v1173, 7
    %v1175 = vsub.s32 %v1172, %v1174
    %v1176 = vrot.slane %v1169, %v1175
    %v1178 = vmul.f32 %v1158, %v1176
    %v1179 = vld [vmem:[%s6] sm:$0x1]
    %v1180 = vmul.f32 %v1150, %v1178
    %v1181 = vsub.f32 %v1179, %v1180
    %v1183 = vlaneseq
    %v1184 = vshrl.u32 %v1183, 7
    %v1185 = vsub.s32 0, %v1184
    %v1186 = vrot.slane %v1181, %v1185
    %v1188 = vsel %vm1065, %v1178, %v1186
    %v1189 = vld [vmem:[#allocation12] sm:$0xff]
    %v1190 = vld [vmem:[#allocation12 + $0x8] sm:$0xff]
    %vm1191 = vcmask 130048
    %v1193 = vsel %vm1191, %v1188, 0
    %1195 = vmatprep.subr.mxu0 0.0
    %1196 = vmatpush1.msra.mxu0 %v1189
    %1197 = vmatprep.subr.mxu0 0.0
    %1198 = vmatpush1.msra.mxu0 %v1190
    %1199 = vmatprep.subr.mxu0 0.0
    %1200 = vmatpush1.msra.mxu0 0.0
    %1201 = vmatprep.subr.mxu0 0.0
    %1202 = vmatpush1.msra.mxu0 0.0
    %1203 = vmatprep.subr.mxu0 0.0
    %1204 = vmatpush1.msra.mxu0 0.0
    %1205 = vmatprep.subr.mxu0 0.0
    %1206 = vmatpush1.msra.mxu0 0.0
    %1207 = vmatprep.subr.mxu0 0.0
    %1208 = vmatpush1.msra.mxu0 0.0
    %1209 = vmatprep.subr.mxu0 0.0
    %1210 = vmatpush1.msra.mxu0 0.0
    %1211 = vmatprep.subr.mxu0 0.0
    %1212 = vmatpush1.msra.mxu0 0.0
    %1213 = vmatprep.subr.mxu0 0.0
    %1214 = vmatpush1.msra.mxu0 0.0
    %1215 = vmatprep.subr.mxu0 0.0
    %1216 = vmatpush1.msra.mxu0 0.0
    %1217 = vmatprep.subr.mxu0 0.0
    %1218 = vmatpush1.msra.mxu0 0.0
    %1219 = vmatprep.subr.mxu0 0.0
    %1220 = vmatpush1.msra.mxu0 0.0
    %1221 = vmatprep.subr.mxu0 0.0
    %1222 = vmatpush1.msra.mxu0 0.0
    %1223 = vmatprep.subr.mxu0 0.0
    %1224 = vmatpush1.msra.mxu0 0.0
    %1225 = vmatprep.subr.mxu0 0.0
    %1226 = vmatpush1.msra.mxu0 0.0
    %1227 = vmatprep.subr.mxu0 0.0
    %1228 = vmatpush1.msra.mxu0 0.0
    %1229 = vmatprep.subr.mxu0 0.0
    %1230 = vmatpush1.msra.mxu0 0.0
    %1231 = vmatprep.subr.mxu0 0.0
    %1232 = vmatpush1.msra.mxu0 0.0
    %1233 = vmatprep.subr.mxu0 0.0
    %1234 = vmatpush1.msra.mxu0 0.0
    %1235 = vmatprep.subr.mxu0 0.0
    %1236 = vmatpush1.msra.mxu0 0.0
    %1237 = vmatprep.subr.mxu0 0.0
    %1238 = vmatpush1.msra.mxu0 0.0
    %1239 = vmatprep.subr.mxu0 0.0
    %1240 = vmatpush1.msra.mxu0 0.0
    %1241 = vmatprep.subr.mxu0 0.0
    %1242 = vmatpush1.msra.mxu0 0.0
    %1243 = vmatprep.subr.mxu0 0.0
    %1244 = vmatpush1.msra.mxu0 0.0
    %1245 = vmatprep.subr.mxu0 0.0
    %1246 = vmatpush1.msra.mxu0 0.0
    %1247 = vmatprep.subr.mxu0 0.0
    %1248 = vmatpush1.msra.mxu0 0.0
    %1249 = vmatprep.subr.mxu0 0.0
    %1250 = vmatpush1.msra.mxu0 0.0
    %1251 = vmatprep.subr.mxu0 0.0
    %1252 = vmatpush1.msra.mxu0 0.0
    %1253 = vmatprep.subr.mxu0 0.0
    %1254 = vmatpush1.msra.mxu0 0.0
    %1255 = vmatprep.subr.mxu0 0.0
    %1256 = vmatpush1.msra.mxu0 0.0
    %1257 = vmatprep.subr.mxu0 0.0
    %1258 = vmatpush1.msra.mxu0 0.0
    %1259 = vmatprep.mubr.f32.mxu0 0.0
    %1260 = vmatmul.mubr.f32.gmra.mrb[0].mxu0 %v1193
    %v1261 = vpop.f32.mrb[0].mxu0
    %v1262 = vadd.f32 0.0, %v1261
    %v1263 = vpop.f32.mrb[0].mxu0
    %1264 = vdwg.mxu0
    %v1265 = vlaneseq
    %v1266 = vshrl.u32 %v1265, 7
    %v1267 = vsub.s32 0, %v1266
    %v1268 = vrot.slane %v1262, %v1267
    %v1269 = vmul.f32 %v1040, %v1268
    %v1270 = vmul.f32 %v1043, %v1268
    %v1271 = vlaneseq
    %v1272 = vshrl.u32 %v1271, 7
    %v1273 = vsub.s32 1, %v1272
    %v1274 = vrot.slane %v1262, %v1273
    %v1275 = vadd.f32 %v1269, %v1274
    %v1276 = vadd.f32 %v1270, %v1274
    %vm1277 = vcmp.ge.f32.partialorder %v1275, 0.0
    %vm1278 = vcmp.ge.f32.partialorder %v1276, 0.0
    %v1279 = vmul.f32 %v1275, 0.2
    %v1280 = vmul.f32 %v1276, 0.2
    %v1281 = vsel %vm1277, %v1275, %v1279
    %v1282 = vsel %vm1278, %v1276, %v1280
    %v1283 = vld [vmem:[%s9] sm:$0xf]
    %v1284 = vld [vmem:[%s9 + $0x4] sm:$0xf]
    %v1285 = vld [vmem:[%s9 + $0x8] sm:$0xf]
    %v1286 = vld [vmem:[%s9 + $0xc] sm:$0xf]
    %v1287 = vpack.c.bf16 %v1282, %v1281
    %v1292 = vunpack.c.l.b16 %v1283
    %v1293 = vunpack.c.l.b16 %v1284
    %v1294 = vunpack.c.l.b16 %v1285
    %v1295 = vunpack.c.l.b16 %v1286
    %v1296 = vpack.c.b16 %v1293, %v1292
    %v1297 = vpack.c.b16 %v1295, %v1294
    %v1299 = vsel %vm1191, %v1296, 0
    %v1302 = vsel %vm1191, %v1297, 0
    %1304 = vmatprep.subr.bf16.mxu0 0
    %1305 = vmatpush1.bf16.msra.mxu0 %v1287
    %1306 = vmatprep.subr.bf16.mxu0 0
    %1307 = vmatpush1.bf16.msra.mxu0 0
    %1308 = vmatprep.subr.bf16.mxu0 0
    %1309 = vmatpush1.bf16.msra.mxu0 0
    %1310 = vmatprep.subr.bf16.mxu0 0
    %1311 = vmatpush1.bf16.msra.mxu0 0
    %1312 = vmatprep.subr.bf16.mxu0 0
    %1313 = vmatpush1.bf16.msra.mxu0 0
    %1314 = vmatprep.subr.bf16.mxu0 0
    %1315 = vmatpush1.bf16.msra.mxu0 0
    %1316 = vmatprep.subr.bf16.mxu0 0
    %1317 = vmatpush1.bf16.msra.mxu0 0
    %1318 = vmatprep.subr.bf16.mxu0 0
    %1319 = vmatpush1.bf16.msra.mxu0 0
    %1320 = vmatprep.subr.bf16.mxu0 0
    %1321 = vmatpush1.bf16.msra.mxu0 0
    %1322 = vmatprep.subr.bf16.mxu0 0
    %1323 = vmatpush1.bf16.msra.mxu0 0
    %1324 = vmatprep.subr.bf16.mxu0 0
    %1325 = vmatpush1.bf16.msra.mxu0 0
    %1326 = vmatprep.subr.bf16.mxu0 0
    %1327 = vmatpush1.bf16.msra.mxu0 0
    %1328 = vmatprep.subr.bf16.mxu0 0
    %1329 = vmatpush1.bf16.msra.mxu0 0
    %1330 = vmatprep.subr.bf16.mxu0 0
    %1331 = vmatpush1.bf16.msra.mxu0 0
    %1332 = vmatprep.subr.bf16.mxu0 0
    %1333 = vmatpush1.bf16.msra.mxu0 0
    %1334 = vmatprep.subr.bf16.mxu0 0
    %1335 = vmatpush1.bf16.msra.mxu0 0
    %1336 = vmatprep.mubr.bf16.mxu0 0
    %1337 = vmatmul.mubr.bf16.gmra.mrb[0].mxu0 %v1299
    %v1338 = vpop.f32.mrb[0].mxu0
    %v1339 = vadd.f32 0.0, %v1338
    %v1340 = vpop.f32.mrb[0].mxu0
    %v1341 = vpop.f32.mrb[0].mxu0
    %v1342 = vadd.f32 0.0, %v1341
    %v1343 = vpop.f32.mrb[0].mxu0
    %1344 = vmatprep.mubr.bf16.mxu0 0
    %1345 = vmatmul.mubr.bf16.gmra.mrb[0].mxu0 %v1302
    %v1346 = vpop.f32.mrb[0].mxu0
    %v1347 = vadd.f32 0.0, %v1346
    %v1348 = vpop.f32.mrb[0].mxu0
    %v1349 = vpop.f32.mrb[0].mxu0
    %v1350 = vadd.f32 0.0, %v1349
    %v1351 = vpop.f32.mrb[0].mxu0
    %1352 = vdwg.mxu0
    %v1353 = vpack.c.bf16 %v1339, %v1339
    %v1354 = vpack.c.bf16 %v1342, %v1342
    %v1355 = vpack.c.bf16 %v1347, %v1347
    %v1356 = vpack.c.bf16 %v1350, %v1350
    %v1357 = vld [vmem:[#allocation13] sm:$0xf]
    %v1358 = vld [vmem:[#allocation13 + $0x4] sm:$0xf]
    %v1359 = vld [vmem:[#allocation13 + $0x8] sm:$0xf]
    %v1360 = vld [vmem:[#allocation13 + $0xc] sm:$0xf]
    %v1361 = vld [vmem:[#allocation13 + $0x10] sm:$0xf]
    %v1362 = vld [vmem:[#allocation13 + $0x14] sm:$0xf]
    %v1363 = vld [vmem:[#allocation13 + $0x18] sm:$0xf]
    %v1364 = vld [vmem:[#allocation13 + $0x1c] sm:$0xf]
    %v1365 = vld [vmem:[#allocation13 + $0x20] sm:$0xf]
    %v1366 = vld [vmem:[#allocation13 + $0x24] sm:$0xf]
    %v1367 = vld [vmem:[#allocation13 + $0x28] sm:$0xf]
    %v1368 = vld [vmem:[#allocation13 + $0x2c] sm:$0xf]
    %v1369 = vld [vmem:[#allocation13 + $0x30] sm:$0xf]
    %v1370 = vld [vmem:[#allocation13 + $0x34] sm:$0xf]
    %v1371 = vld [vmem:[#allocation13 + $0x38] sm:$0xf]
    %v1372 = vld [vmem:[#allocation13 + $0x3c] sm:$0xf]
    %v1373 = vld [vmem:[#allocation13 + $0x40] sm:$0xf]
    %v1374 = vld [vmem:[#allocation13 + $0x44] sm:$0xf]
    %v1375 = vld [vmem:[#allocation13 + $0x48] sm:$0xf]
    %v1376 = vld [vmem:[#allocation13 + $0x4c] sm:$0xf]
    %v1377 = vld [vmem:[#allocation13 + $0x50] sm:$0xf]
    %v1378 = vld [vmem:[#allocation13 + $0x54] sm:$0xf]
    %v1379 = vld [vmem:[#allocation13 + $0x58] sm:$0xf]
    %v1380 = vld [vmem:[#allocation13 + $0x5c] sm:$0xf]
    %v1381 = vld [vmem:[#allocation13 + $0x60] sm:$0xf]
    %v1382 = vld [vmem:[#allocation13 + $0x64] sm:$0xf]
    %v1383 = vld [vmem:[#allocation13 + $0x68] sm:$0xf]
    %v1384 = vld [vmem:[#allocation13 + $0x6c] sm:$0xf]
    %v1385 = vld [vmem:[#allocation13 + $0x70] sm:$0xf]
    %v1386 = vld [vmem:[#allocation13 + $0x74] sm:$0xf]
    %v1387 = vld [vmem:[#allocation13 + $0x78] sm:$0xf]
    %v1388 = vld [vmem:[#allocation13 + $0x7c] sm:$0xf]
    %v1389 = vld [vmem:[#allocation13 + $0x80] sm:$0xf]
    %v1390 = vld [vmem:[#allocation13 + $0x84] sm:$0xf]
    %v1391 = vld [vmem:[#allocation13 + $0x88] sm:$0xf]
    %v1392 = vld [vmem:[#allocation13 + $0x8c] sm:$0xf]
    %v1393 = vld [vmem:[#allocation13 + $0x90] sm:$0xf]
    %v1394 = vld [vmem:[#allocation13 + $0x94] sm:$0xf]
    %v1395 = vld [vmem:[#allocation13 + $0x98] sm:$0xf]
    %v1396 = vld [vmem:[#allocation13 + $0x9c] sm:$0xf]
    %v1397 = vld [vmem:[#allocation13 + $0xa0] sm:$0xf]
    %v1398 = vld [vmem:[#allocation13 + $0xa4] sm:$0xf]
    %v1399 = vld [vmem:[#allocation13 + $0xa8] sm:$0xf]
    %v1400 = vld [vmem:[#allocation13 + $0xac] sm:$0xf]
    %v1401 = vld [vmem:[#allocation13 + $0xb0] sm:$0xf]
    %v1402 = vld [vmem:[#allocation13 + $0xb4] sm:$0xf]
    %v1403 = vld [vmem:[#allocation13 + $0xb8] sm:$0xf]
    %v1404 = vld [vmem:[#allocation13 + $0xbc] sm:$0xf]
    %v1405 = vld [vmem:[#allocation13 + $0xc0] sm:$0xf]
    %v1406 = vld [vmem:[#allocation13 + $0xc4] sm:$0xf]
    %v1407 = vld [vmem:[#allocation13 + $0xc8] sm:$0xf]
    %v1408 = vld [vmem:[#allocation13 + $0xcc] sm:$0xf]
    %v1409 = vld [vmem:[#allocation13 + $0xd0] sm:$0xf]
    %v1410 = vld [vmem:[#allocation13 + $0xd4] sm:$0xf]
    %v1411 = vld [vmem:[#allocation13 + $0xd8] sm:$0xf]
    %v1412 = vld [vmem:[#allocation13 + $0xdc] sm:$0xf]
    %v1413 = vld [vmem:[#allocation13 + $0xe0] sm:$0xf]
    %v1414 = vld [vmem:[#allocation13 + $0xe4] sm:$0xf]
    %v1415 = vld [vmem:[#allocation13 + $0xe8] sm:$0xf]
    %v1416 = vld [vmem:[#allocation13 + $0xec] sm:$0xf]
    %v1417 = vld [vmem:[#allocation13 + $0xf0] sm:$0xf]
    %v1418 = vld [vmem:[#allocation13 + $0xf4] sm:$0xf]
    %v1419 = vld [vmem:[#allocation13 + $0xf8] sm:$0xf]
    %v1420 = vld [vmem:[#allocation13 + $0xfc] sm:$0xf]
    %v1485 = vunpack.c.l.b16 %v1357
    %v1486 = vunpack.c.l.b16 %v1358
    %v1487 = vunpack.c.l.b16 %v1359
    %v1488 = vunpack.c.l.b16 %v1360
    %v1489 = vunpack.c.l.b16 %v1361
    %v1490 = vunpack.c.l.b16 %v1362
    %v1491 = vunpack.c.l.b16 %v1363
    %v1492 = vunpack.c.l.b16 %v1364
    %v1493 = vunpack.c.l.b16 %v1365
    %v1494 = vunpack.c.l.b16 %v1366
    %v1495 = vunpack.c.l.b16 %v1367
    %v1496 = vunpack.c.l.b16 %v1368
    %v1497 = vunpack.c.l.b16 %v1369
    %v1498 = vunpack.c.l.b16 %v1370
    %v1499 = vunpack.c.l.b16 %v1371
    %v1500 = vunpack.c.l.b16 %v1372
    %v1501 = vunpack.c.l.b16 %v1373
    %v1502 = vunpack.c.l.b16 %v1374
    %v1503 = vunpack.c.l.b16 %v1375
    %v1504 = vunpack.c.l.b16 %v1376
    %v1505 = vunpack.c.l.b16 %v1377
    %v1506 = vunpack.c.l.b16 %v1378
    %v1507 = vunpack.c.l.b16 %v1379
    %v1508 = vunpack.c.l.b16 %v1380
    %v1509 = vunpack.c.l.b16 %v1381
    %v1510 = vunpack.c.l.b16 %v1382
    %v1511 = vunpack.c.l.b16 %v1383
    %v1512 = vunpack.c.l.b16 %v1384
    %v1513 = vunpack.c.l.b16 %v1385
    %v1514 = vunpack.c.l.b16 %v1386
    %v1515 = vunpack.c.l.b16 %v1387
    %v1516 = vunpack.c.l.b16 %v1388
    %v1517 = vunpack.c.l.b16 %v1389
    %v1518 = vunpack.c.l.b16 %v1390
    %v1519 = vunpack.c.l.b16 %v1391
    %v1520 = vunpack.c.l.b16 %v1392
    %v1521 = vunpack.c.l.b16 %v1393
    %v1522 = vunpack.c.l.b16 %v1394
    %v1523 = vunpack.c.l.b16 %v1395
    %v1524 = vunpack.c.l.b16 %v1396
    %v1525 = vunpack.c.l.b16 %v1397
    %v1526 = vunpack.c.l.b16 %v1398
    %v1527 = vunpack.c.l.b16 %v1399
    %v1528 = vunpack.c.l.b16 %v1400
    %v1529 = vunpack.c.l.b16 %v1401
    %v1530 = vunpack.c.l.b16 %v1402
    %v1531 = vunpack.c.l.b16 %v1403
    %v1532 = vunpack.c.l.b16 %v1404
    %v1533 = vunpack.c.l.b16 %v1405
    %v1534 = vunpack.c.l.b16 %v1406
    %v1535 = vunpack.c.l.b16 %v1407
    %v1536 = vunpack.c.l.b16 %v1408
    %v1537 = vunpack.c.l.b16 %v1409
    %v1538 = vunpack.c.l.b16 %v1410
    %v1539 = vunpack.c.l.b16 %v1411
    %v1540 = vunpack.c.l.b16 %v1412
    %v1541 = vunpack.c.l.b16 %v1413
    %v1542 = vunpack.c.l.b16 %v1414
    %v1543 = vunpack.c.l.b16 %v1415
    %v1544 = vunpack.c.l.b16 %v1416
    %v1545 = vunpack.c.l.b16 %v1417
    %v1546 = vunpack.c.l.b16 %v1418
    %v1547 = vunpack.c.l.b16 %v1419
    %v1548 = vunpack.c.l.b16 %v1420
    %v1549 = vpack.c.b16 %v1486, %v1485
    %v1550 = vpack.c.b16 %v1488, %v1487
    %v1551 = vpack.c.b16 %v1490, %v1489
    %v1552 = vpack.c.b16 %v1492, %v1491
    %v1553 = vpack.c.b16 %v1494, %v1493
    %v1554 = vpack.c.b16 %v1496, %v1495
    %v1555 = vpack.c.b16 %v1498, %v1497
    %v1556 = vpack.c.b16 %v1500, %v1499
    %v1557 = vpack.c.b16 %v1502, %v1501
    %v1558 = vpack.c.b16 %v1504, %v1503
    %v1559 = vpack.c.b16 %v1506, %v1505
    %v1560 = vpack.c.b16 %v1508, %v1507
    %v1561 = vpack.c.b16 %v1510, %v1509
    %v1562 = vpack.c.b16 %v1512, %v1511
    %v1563 = vpack.c.b16 %v1514, %v1513
    %v1564 = vpack.c.b16 %v1516, %v1515
    %v1565 = vpack.c.b16 %v1518, %v1517
    %v1566 = vpack.c.b16 %v1520, %v1519
    %v1567 = vpack.c.b16 %v1522, %v1521
    %v1568 = vpack.c.b16 %v1524, %v1523
    %v1569 = vpack.c.b16 %v1526, %v1525
    %v1570 = vpack.c.b16 %v1528, %v1527
    %v1571 = vpack.c.b16 %v1530, %v1529
    %v1572 = vpack.c.b16 %v1532, %v1531
    %v1573 = vpack.c.b16 %v1534, %v1533
    %v1574 = vpack.c.b16 %v1536, %v1535
    %v1575 = vpack.c.b16 %v1538, %v1537
    %v1576 = vpack.c.b16 %v1540, %v1539
    %v1577 = vpack.c.b16 %v1542, %v1541
    %v1578 = vpack.c.b16 %v1544, %v1543
    %v1579 = vpack.c.b16 %v1546, %v1545
    %v1580 = vpack.c.b16 %v1548, %v1547
    %1613 = vmatprep.subr.bf16.mxu0 0
    %1614 = vmatpush1.bf16.msra.mxu0 %v1549
    %1615 = vmatprep.subr.bf16.mxu0 0
    %1616 = vmatpush1.bf16.msra.mxu0 %v1550
    %1617 = vmatprep.subr.bf16.mxu0 0
    %1618 = vmatpush1.bf16.msra.mxu0 %v1551
    %1619 = vmatprep.subr.bf16.mxu0 0
    %1620 = vmatpush1.bf16.msra.mxu0 %v1552
    %1621 = vmatprep.subr.bf16.mxu0 0
    %1622 = vmatpush1.bf16.msra.mxu0 %v1553
    %1623 = vmatprep.subr.bf16.mxu0 0
    %1624 = vmatpush1.bf16.msra.mxu0 %v1554
    %1625 = vmatprep.subr.bf16.mxu0 0
    %1626 = vmatpush1.bf16.msra.mxu0 %v1555
    %1627 = vmatprep.subr.bf16.mxu0 0
    %1628 = vmatpush1.bf16.msra.mxu0 %v1556
    %1629 = vmatprep.subr.bf16.mxu0 0
    %1630 = vmatpush1.bf16.msra.mxu0 %v1557
    %1631 = vmatprep.subr.bf16.mxu0 0
    %1632 = vmatpush1.bf16.msra.mxu0 %v1558
    %1633 = vmatprep.subr.bf16.mxu0 0
    %1634 = vmatpush1.bf16.msra.mxu0 %v1559
    %1635 = vmatprep.subr.bf16.mxu0 0
    %1636 = vmatpush1.bf16.msra.mxu0 %v1560
    %1637 = vmatprep.subr.bf16.mxu0 0
    %1638 = vmatpush1.bf16.msra.mxu0 %v1561
    %1639 = vmatprep.subr.bf16.mxu0 0
    %1640 = vmatpush1.bf16.msra.mxu0 %v1562
    %1641 = vmatprep.subr.bf16.mxu0 0
    %1642 = vmatpush1.bf16.msra.mxu0 %v1563
    %1643 = vmatprep.subr.bf16.mxu0 0
    %1644 = vmatpush1.bf16.msra.mxu0 %v1564
    %1645 = vmatprep.mubr.bf16.mxu0 %v1354
    %1646 = vmatmul.mubr.bf16.gmra.mrb[0].mxu0 %v1353
    %v1647 = vpop.f32.mrb[0].mxu0
    %v1648 = vadd.f32 0.0, %v1647
    %v1649 = vpop.f32.mrb[0].mxu0
    %v1650 = vpop.f32.mrb[0].mxu0
    %v1651 = vpop.f32.mrb[0].mxu0
    %1652 = vdwg.mxu0
    %1653 = vmatprep.subr.bf16.mxu0 0
    %1654 = vmatpush1.bf16.msra.mxu0 %v1565
    %1655 = vmatprep.subr.bf16.mxu0 0
    %1656 = vmatpush1.bf16.msra.mxu0 %v1566
    %1657 = vmatprep.subr.bf16.mxu0 0
    %1658 = vmatpush1.bf16.msra.mxu0 %v1567
    %1659 = vmatprep.subr.bf16.mxu0 0
    %1660 = vmatpush1.bf16.msra.mxu0 %v1568
    %1661 = vmatprep.subr.bf16.mxu0 0
    %1662 = vmatpush1.bf16.msra.mxu0 %v1569
    %1663 = vmatprep.subr.bf16.mxu0 0
    %1664 = vmatpush1.bf16.msra.mxu0 %v1570
    %1665 = vmatprep.subr.bf16.mxu0 0
    %1666 = vmatpush1.bf16.msra.mxu0 %v1571
    %1667 = vmatprep.subr.bf16.mxu0 0
    %1668 = vmatpush1.bf16.msra.mxu0 %v1572
    %1669 = vmatprep.subr.bf16.mxu0 0
    %1670 = vmatpush1.bf16.msra.mxu0 %v1573
    %1671 = vmatprep.subr.bf16.mxu0 0
    %1672 = vmatpush1.bf16.msra.mxu0 %v1574
    %1673 = vmatprep.subr.bf16.mxu0 0
    %1674 = vmatpush1.bf16.msra.mxu0 %v1575
    %1675 = vmatprep.subr.bf16.mxu0 0
    %1676 = vmatpush1.bf16.msra.mxu0 %v1576
    %1677 = vmatprep.subr.bf16.mxu0 0
    %1678 = vmatpush1.bf16.msra.mxu0 %v1577
    %1679 = vmatprep.subr.bf16.mxu0 0
    %1680 = vmatpush1.bf16.msra.mxu0 %v1578
    %1681 = vmatprep.subr.bf16.mxu0 0
    %1682 = vmatpush1.bf16.msra.mxu0 %v1579
    %1683 = vmatprep.subr.bf16.mxu0 0
    %1684 = vmatpush1.bf16.msra.mxu0 %v1580
    %1685 = vmatprep.mubr.bf16.mxu0 %v1356
    %1686 = vmatmul.mubr.bf16.gmra.mrb[0].mxu0 %v1355
    %v1687 = vpop.f32.mrb[0].mxu0
    %v1688 = vadd.f32 %v1648, %v1687
    %v1689 = vpop.f32.mrb[0].mxu0
    %v1690 = vpop.f32.mrb[0].mxu0
    %v1691 = vpop.f32.mrb[0].mxu0
    %1692 = vdwg.mxu0
    %v1693 = vrot.slane %v1688, 4
    %v1694 = vadd.f32 %v1688, %v1693
    %v1695 = vrot.slane %v1694, 2
    %v1696 = vadd.f32 %v1694, %v1695
    %v1697 = vrot.slane %v1696, 1
    %v1698 = vadd.f32 %v1696, %v1697
    %v1699 = vrcp.pop 8.0
    %v1700 = vmul.f32 %v1698, %v1699
    %v1701 = vmul.f32 %v1688, %v1688
    %v1702 = vrot.slane %v1701, 4
    %v1703 = vadd.f32 %v1701, %v1702
    %v1704 = vrot.slane %v1703, 2
    %v1705 = vadd.f32 %v1703, %v1704
    %v1706 = vrot.slane %v1705, 1
    %v1707 = vadd.f32 %v1705, %v1706
    %v1708 = vmul.f32 %v1707, %v1699
    %v1709 = vsel %vm1065, %v1700, %v1708
    %v1710 = vld [vmem:[#allocation15] sm:$0xff]
    %v1711 = vld [vmem:[#allocation15 + $0x8] sm:$0xff]
    %v1712 = vld [vmem:[#allocation15 + $0x10] sm:$0xff]
    %v1713 = vld [vmem:[#allocation15 + $0x18] sm:$0xff]
    %v1714 = vld [vmem:[#allocation15 + $0x20] sm:$0xff]
    %v1715 = vld [vmem:[#allocation15 + $0x28] sm:$0xff]
    %v1716 = vld [vmem:[#allocation15 + $0x30] sm:$0xff]
    %v1717 = vld [vmem:[#allocation15 + $0x38] sm:$0xff]
    %v1718 = vld [vmem:[#allocation15 + $0x40] sm:$0xff]
    %v1719 = vld [vmem:[#allocation15 + $0x48] sm:$0xff]
    %v1720 = vld [vmem:[#allocation15 + $0x50] sm:$0xff]
    %v1721 = vld [vmem:[#allocation15 + $0x58] sm:$0xff]
    %v1722 = vld [vmem:[#allocation15 + $0x60] sm:$0xff]
    %v1723 = vld [vmem:[#allocation15 + $0x68] sm:$0xff]
    %v1724 = vld [vmem:[#allocation15 + $0x70] sm:$0xff]
    %v1725 = vld [vmem:[#allocation15 + $0x78] sm:$0xff]
    %1726 = vmatprep.subr.mxu0 0.0
    %1727 = vmatpush1.msra.mxu0 %v1710
    %1728 = vmatprep.subr.mxu0 0.0
    %1729 = vmatpush1.msra.mxu0 %v1711
    %1730 = vmatprep.subr.mxu0 0.0
    %1731 = vmatpush1.msra.mxu0 %v1712
    %1732 = vmatprep.subr.mxu0 0.0
    %1733 = vmatpush1.msra.mxu0 %v1713
    %1734 = vmatprep.subr.mxu0 0.0
    %1735 = vmatpush1.msra.mxu0 %v1714
    %1736 = vmatprep.subr.mxu0 0.0
    %1737 = vmatpush1.msra.mxu0 %v1715
    %1738 = vmatprep.subr.mxu0 0.0
    %1739 = vmatpush1.msra.mxu0 %v1716
    %1740 = vmatprep.subr.mxu0 0.0
    %1741 = vmatpush1.msra.mxu0 %v1717
    %1742 = vmatprep.subr.mxu0 0.0
    %1743 = vmatpush1.msra.mxu0 %v1718
    %1744 = vmatprep.subr.mxu0 0.0
    %1745 = vmatpush1.msra.mxu0 %v1719
    %1746 = vmatprep.subr.mxu0 0.0
    %1747 = vmatpush1.msra.mxu0 %v1720
    %1748 = vmatprep.subr.mxu0 0.0
    %1749 = vmatpush1.msra.mxu0 %v1721
    %1750 = vmatprep.subr.mxu0 0.0
    %1751 = vmatpush1.msra.mxu0 %v1722
    %1752 = vmatprep.subr.mxu0 0.0
    %1753 = vmatpush1.msra.mxu0 %v1723
    %1754 = vmatprep.subr.mxu0 0.0
    %1755 = vmatpush1.msra.mxu0 %v1724
    %1756 = vmatprep.subr.mxu0 0.0
    %1757 = vmatpush1.msra.mxu0 %v1725
    %1758 = vmatprep.subr.mxu0 0.0
    %1759 = vmatpush1.msra.mxu0 0.0
    %1760 = vmatprep.subr.mxu0 0.0
    %1761 = vmatpush1.msra.mxu0 0.0
    %1762 = vmatprep.subr.mxu0 0.0
    %1763 = vmatpush1.msra.mxu0 0.0
    %1764 = vmatprep.subr.mxu0 0.0
    %1765 = vmatpush1.msra.mxu0 0.0
    %1766 = vmatprep.subr.mxu0 0.0
    %1767 = vmatpush1.msra.mxu0 0.0
    %1768 = vmatprep.subr.mxu0 0.0
    %1769 = vmatpush1.msra.mxu0 0.0
    %1770 = vmatprep.subr.mxu0 0.0
    %1771 = vmatpush1.msra.mxu0 0.0
    %1772 = vmatprep.subr.mxu0 0.0
    %1773 = vmatpush1.msra.mxu0 0.0
    %1774 = vmatprep.subr.mxu0 0.0
    %1775 = vmatpush1.msra.mxu0 0.0
    %1776 = vmatprep.subr.mxu0 0.0
    %1777 = vmatpush1.msra.mxu0 0.0
    %1778 = vmatprep.subr.mxu0 0.0
    %1779 = vmatpush1.msra.mxu0 0.0
    %1780 = vmatprep.subr.mxu0 0.0
    %1781 = vmatpush1.msra.mxu0 0.0
    %1782 = vmatprep.subr.mxu0 0.0
    %1783 = vmatpush1.msra.mxu0 0.0
    %1784 = vmatprep.subr.mxu0 0.0
    %1785 = vmatpush1.msra.mxu0 0.0
    %1786 = vmatprep.subr.mxu0 0.0
    %1787 = vmatpush1.msra.mxu0 0.0
    %1788 = vmatprep.subr.mxu0 0.0
    %1789 = vmatpush1.msra.mxu0 0.0
    %1790 = vmatprep.mubr.f32.mxu0 0.0
    %1791 = vmatmul.mubr.f32.gmra.mrb[0].mxu0 %v1709
    %v1792 = vpop.f32.mrb[0].mxu0
    %v1793 = vadd.f32 0.0, %v1792
    %v1794 = vpop.f32.mrb[0].mxu0
    %1795 = vdwg.mxu0
    %v1796 = vmul.f32 %v1793, %v1793
    %v1798 = vrot.slane %v1796, 7
    %v1800 = vsub.f32 %v1793, %v1798
    %v1801 = vld [vmem:[%s11] sm:$0x1]
    %v1802 = vadd.f32 %v1800, 1e-05
    %v1803 = vrsqrt.pop %v1802
    %v1806 = vunpack.c.l.s4 1966171168
    %v1807 = vunpack.c.0.s8 %v1806
    %v1808 = vlaneseq
    %v1809 = vshrl.u32 %v1808, 7
    %v1810 = vsub.s32 %v1807, %v1809
    %v1811 = vrot.slane %v1803, %v1810
    %v1812 = vcombine.high %v1811, %v1811
    %v1814 = vunpack.c.l.s4 1966171168
    %v1815 = vunpack.c.0.s8 %v1814
    %v1816 = vlaneseq
    %v1817 = vshrl.u32 %v1816, 7
    %v1818 = vsub.s32 %v1815, %v1817
    %v1819 = vrot.slane %v1812, %v1818
    %v1821 = vmul.f32 %v1801, %v1819
    %v1822 = vld [vmem:[%s12] sm:$0x1]
    %v1823 = vmul.f32 %v1793, %v1821
    %v1824 = vsub.f32 %v1822, %v1823
    %v1826 = vlaneseq
    %v1827 = vshrl.u32 %v1826, 7
    %v1828 = vsub.s32 0, %v1827
    %v1829 = vrot.slane %v1824, %v1828
    %v1831 = vsel %vm1065, %v1821, %v1829
    %v1832 = vld [vmem:[#allocation16] sm:$0xff]
    %v1833 = vld [vmem:[#allocation16 + $0x8] sm:$0xff]
    %v1834 = vld [vmem:[#allocation16 + $0x10] sm:$0xff]
    %v1835 = vld [vmem:[#allocation16 + $0x18] sm:$0xff]
    %v1837 = vsel %vm456, %v1831, 0
    %1839 = vmatprep.subr.mxu0 0.0
    %1840 = vmatpush1.msra.mxu0 %v1832
    %1841 = vmatprep.subr.mxu0 0.0
    %1842 = vmatpush1.msra.mxu0 %v1833
    %1843 = vmatprep.subr.mxu0 0.0
    %1844 = vmatpush1.msra.mxu0 %v1834
    %1845 = vmatprep.subr.mxu0 0.0
    %1846 = vmatpush1.msra.mxu0 %v1835
    %1847 = vmatprep.subr.mxu0 0.0
    %1848 = vmatpush1.msra.mxu0 0.0
    %1849 = vmatprep.subr.mxu0 0.0
    %1850 = vmatpush1.msra.mxu0 0.0
    %1851 = vmatprep.subr.mxu0 0.0
    %1852 = vmatpush1.msra.mxu0 0.0
    %1853 = vmatprep.subr.mxu0 0.0
    %1854 = vmatpush1.msra.mxu0 0.0
    %1855 = vmatprep.subr.mxu0 0.0
    %1856 = vmatpush1.msra.mxu0 0.0
    %1857 = vmatprep.subr.mxu0 0.0
    %1858 = vmatpush1.msra.mxu0 0.0
    %1859 = vmatprep.subr.mxu0 0.0
    %1860 = vmatpush1.msra.mxu0 0.0
    %1861 = vmatprep.subr.mxu0 0.0
    %1862 = vmatpush1.msra.mxu0 0.0
    %1863 = vmatprep.subr.mxu0 0.0
    %1864 = vmatpush1.msra.mxu0 0.0
    %1865 = vmatprep.subr.mxu0 0.0
    %1866 = vmatpush1.msra.mxu0 0.0
    %1867 = vmatprep.subr.mxu0 0.0
    %1868 = vmatpush1.msra.mxu0 0.0
    %1869 = vmatprep.subr.mxu0 0.0
    %1870 = vmatpush1.msra.mxu0 0.0
    %1871 = vmatprep.subr.mxu0 0.0
    %1872 = vmatpush1.msra.mxu0 0.0
    %1873 = vmatprep.subr.mxu0 0.0
    %1874 = vmatpush1.msra.mxu0 0.0
    %1875 = vmatprep.subr.mxu0 0.0
    %1876 = vmatpush1.msra.mxu0 0.0
    %1877 = vmatprep.subr.mxu0 0.0
    %1878 = vmatpush1.msra.mxu0 0.0
    %1879 = vmatprep.subr.mxu0 0.0
    %1880 = vmatpush1.msra.mxu0 0.0
    %1881 = vmatprep.subr.mxu0 0.0
    %1882 = vmatpush1.msra.mxu0 0.0
    %1883 = vmatprep.subr.mxu0 0.0
    %1884 = vmatpush1.msra.mxu0 0.0
    %1885 = vmatprep.subr.mxu0 0.0
    %1886 = vmatpush1.msra.mxu0 0.0
    %1887 = vmatprep.subr.mxu0 0.0
    %1888 = vmatpush1.msra.mxu0 0.0
    %1889 = vmatprep.subr.mxu0 0.0
    %1890 = vmatpush1.msra.mxu0 0.0
    %1891 = vmatprep.subr.mxu0 0.0
    %1892 = vmatpush1.msra.mxu0 0.0
    %1893 = vmatprep.subr.mxu0 0.0
    %1894 = vmatpush1.msra.mxu0 0.0
    %1895 = vmatprep.subr.mxu0 0.0
    %1896 = vmatpush1.msra.mxu0 0.0
    %1897 = vmatprep.subr.mxu0 0.0
    %1898 = vmatpush1.msra.mxu0 0.0
    %1899 = vmatprep.subr.mxu0 0.0
    %1900 = vmatpush1.msra.mxu0 0.0
    %1901 = vmatprep.subr.mxu0 0.0
    %1902 = vmatpush1.msra.mxu0 0.0
    %1903 = vmatprep.mubr.f32.mxu0 0.0
    %1904 = vmatmul.mubr.f32.gmra.mrb[0].mxu0 %v1837
    %v1905 = vpop.f32.mrb[0].mxu0
    %v1906 = vadd.f32 0.0, %v1905
    %v1907 = vpop.f32.mrb[0].mxu0
    %1908 = vdwg.mxu0
    %v1909 = vlaneseq
    %v1910 = vshrl.u32 %v1909, 7
    %v1911 = vsub.s32 0, %v1910
    %v1912 = vrot.slane %v1906, %v1911
    %v1913 = vmul.f32 %v1688, %v1912
    %v1914 = vlaneseq
    %v1915 = vshrl.u32 %v1914, 7
    %v1916 = vsub.s32 1, %v1915
    %v1917 = vrot.slane %v1906, %v1916
    %v1918 = vadd.f32 %v1913, %v1917
    %vm1919 = vcmp.ge.f32.partialorder %v1918, 0.0
    %v1920 = vmul.f32 %v1918, 0.2
    %v1921 = vsel %vm1919, %v1918, %v1920
    %v1922 = vld [vmem:[#allocation18] sm:$0xff]
    %v1923 = vld [vmem:[#allocation18 + $0x8] sm:$0xff]
    %v1924 = vld [vmem:[#allocation18 + $0x10] sm:$0xff]
    %vm1925 = vcmask 64512
    %v1927 = vsel %vm1925, %v1922, 0
    %v1930 = vsel %vm1925, %v1923, 0
    %v1933 = vsel %vm1925, %v1924, 0
    %1935 = vmatprep.subr.mxu0 0.0
    %1936 = vmatpush1.msra.mxu0 %v1921
    %1937 = vmatprep.subr.mxu0 0.0
    %1938 = vmatpush1.msra.mxu0 0.0
    %1939 = vmatprep.subr.mxu0 0.0
    %1940 = vmatpush1.msra.mxu0 0.0
    %1941 = vmatprep.subr.mxu0 0.0
    %1942 = vmatpush1.msra.mxu0 0.0
    %1943 = vmatprep.subr.mxu0 0.0
    %1944 = vmatpush1.msra.mxu0 0.0
    %1945 = vmatprep.subr.mxu0 0.0
    %1946 = vmatpush1.msra.mxu0 0.0
    %1947 = vmatprep.subr.mxu0 0.0
    %1948 = vmatpush1.msra.mxu0 0.0
    %1949 = vmatprep.subr.mxu0 0.0
    %1950 = vmatpush1.msra.mxu0 0.0
    %1951 = vmatprep.subr.mxu0 0.0
    %1952 = vmatpush1.msra.mxu0 0.0
    %1953 = vmatprep.subr.mxu0 0.0
    %1954 = vmatpush1.msra.mxu0 0.0
    %1955 = vmatprep.subr.mxu0 0.0
    %1956 = vmatpush1.msra.mxu0 0.0
    %1957 = vmatprep.subr.mxu0 0.0
    %1958 = vmatpush1.msra.mxu0 0.0
    %1959 = vmatprep.subr.mxu0 0.0
    %1960 = vmatpush1.msra.mxu0 0.0
    %1961 = vmatprep.subr.mxu0 0.0
    %1962 = vmatpush1.msra.mxu0 0.0
    %1963 = vmatprep.subr.mxu0 0.0
    %1964 = vmatpush1.msra.mxu0 0.0
    %1965 = vmatprep.subr.mxu0 0.0
    %1966 = vmatpush1.msra.mxu0 0.0
    %1967 = vmatprep.subr.mxu0 0.0
    %1968 = vmatpush1.msra.mxu0 0.0
    %1969 = vmatprep.subr.mxu0 0.0
    %1970 = vmatpush1.msra.mxu0 0.0
    %1971 = vmatprep.subr.mxu0 0.0
    %1972 = vmatpush1.msra.mxu0 0.0
    %1973 = vmatprep.subr.mxu0 0.0
    %1974 = vmatpush1.msra.mxu0 0.0
    %1975 = vmatprep.subr.mxu0 0.0
    %1976 = vmatpush1.msra.mxu0 0.0
    %1977 = vmatprep.subr.mxu0 0.0
    %1978 = vmatpush1.msra.mxu0 0.0
    %1979 = vmatprep.subr.mxu0 0.0
    %1980 = vmatpush1.msra.mxu0 0.0
    %1981 = vmatprep.subr.mxu0 0.0
    %1982 = vmatpush1.msra.mxu0 0.0
    %1983 = vmatprep.subr.mxu0 0.0
    %1984 = vmatpush1.msra.mxu0 0.0
    %1985 = vmatprep.subr.mxu0 0.0
    %1986 = vmatpush1.msra.mxu0 0.0
    %1987 = vmatprep.subr.mxu0 0.0
    %1988 = vmatpush1.msra.mxu0 0.0
    %1989 = vmatprep.subr.mxu0 0.0
    %1990 = vmatpush1.msra.mxu0 0.0
    %1991 = vmatprep.subr.mxu0 0.0
    %1992 = vmatpush1.msra.mxu0 0.0
    %1993 = vmatprep.subr.mxu0 0.0
    %1994 = vmatpush1.msra.mxu0 0.0
    %1995 = vmatprep.subr.mxu0 0.0
    %1996 = vmatpush1.msra.mxu0 0.0
    %1997 = vmatprep.subr.mxu0 0.0
    %1998 = vmatpush1.msra.mxu0 0.0
    %1999 = vmatprep.mubr.f32.mxu0 0.0
    %2000 = vmatmul.mubr.f32.gmra.mrb[0].mxu0 %v1927
    %v2001 = vpop.f32.mrb[0].mxu0
    %v2002 = vadd.f32 0.0, %v2001
    %v2003 = vpop.f32.mrb[0].mxu0
    %2004 = vmatprep.mubr.f32.mxu0 0.0
    %2005 = vmatmul.mubr.f32.gmra.mrb[0].mxu0 %v1930
    %v2006 = vpop.f32.mrb[0].mxu0
    %v2007 = vadd.f32 0.0, %v2006
    %v2008 = vpop.f32.mrb[0].mxu0
    %2009 = vmatprep.mubr.f32.mxu0 0.0
    %2010 = vmatmul.mubr.f32.gmra.mrb[0].mxu0 %v1933
    %v2011 = vpop.f32.mrb[0].mxu0
    %v2012 = vadd.f32 0.0, %v2011
    %v2013 = vpop.f32.mrb[0].mxu0
    %2014 = vdwg.mxu0
    %v2015 = vld [vmem:[#allocation19] sm:$0xff]
    %v2016 = vld [vmem:[#allocation19 + $0x8] sm:$0xff]
    %v2017 = vld [vmem:[#allocation19 + $0x10] sm:$0xff]
    %v2018 = vld [vmem:[#allocation19 + $0x18] sm:$0xff]
    %v2019 = vld [vmem:[#allocation19 + $0x20] sm:$0xff]
    %v2020 = vld [vmem:[#allocation19 + $0x28] sm:$0xff]
    %v2021 = vld [vmem:[#allocation19 + $0x30] sm:$0xff]
    %v2022 = vld [vmem:[#allocation19 + $0x38] sm:$0xff]
    %v2023 = vld [vmem:[#allocation19 + $0x40] sm:$0xff]
    %v2024 = vld [vmem:[#allocation19 + $0x48] sm:$0xff]
    %v2025 = vld [vmem:[#allocation19 + $0x50] sm:$0xff]
    %v2026 = vld [vmem:[#allocation19 + $0x58] sm:$0xff]
    %v2027 = vld [vmem:[#allocation19 + $0x60] sm:$0xff]
    %v2028 = vld [vmem:[#allocation19 + $0x68] sm:$0xff]
    %v2029 = vld [vmem:[#allocation19 + $0x70] sm:$0xff]
    %v2030 = vld [vmem:[#allocation19 + $0x78] sm:$0xff]
    %v2031 = vld [vmem:[#allocation19 + $0x80] sm:$0xff]
    %v2032 = vld [vmem:[#allocation19 + $0x88] sm:$0xff]
    %v2033 = vld [vmem:[#allocation19 + $0x90] sm:$0xff]
    %v2034 = vld [vmem:[#allocation19 + $0x98] sm:$0xff]
    %v2035 = vld [vmem:[#allocation19 + $0xa0] sm:$0xff]
    %v2036 = vld [vmem:[#allocation19 + $0xa8] sm:$0xff]
    %v2037 = vld [vmem:[#allocation19 + $0xb0] sm:$0xff]
    %v2038 = vld [vmem:[#allocation19 + $0xb8] sm:$0xff]
    %v2039 = vld [vmem:[#allocation19 + $0xc0] sm:$0xff]
    %v2040 = vld [vmem:[#allocation19 + $0xc8] sm:$0xff]
    %v2041 = vld [vmem:[#allocation19 + $0xd0] sm:$0xff]
    %v2042 = vld [vmem:[#allocation19 + $0xd8] sm:$0xff]
    %v2043 = vld [vmem:[#allocation19 + $0xe0] sm:$0xff]
    %v2044 = vld [vmem:[#allocation19 + $0xe8] sm:$0xff]
    %v2045 = vld [vmem:[#allocation19 + $0xf0] sm:$0xff]
    %v2046 = vld [vmem:[#allocation19 + $0xf8] sm:$0xff]
    %v2047 = vld [vmem:[#allocation19 + $0x100] sm:$0xff]
    %v2048 = vld [vmem:[#allocation19 + $0x108] sm:$0xff]
    %v2049 = vld [vmem:[#allocation19 + $0x110] sm:$0xff]
    %v2050 = vld [vmem:[#allocation19 + $0x118] sm:$0xff]
    %v2051 = vld [vmem:[#allocation19 + $0x120] sm:$0xff]
    %v2052 = vld [vmem:[#allocation19 + $0x128] sm:$0xff]
    %v2053 = vld [vmem:[#allocation19 + $0x130] sm:$0xff]
    %v2054 = vld [vmem:[#allocation19 + $0x138] sm:$0xff]
    %v2055 = vld [vmem:[#allocation19 + $0x140] sm:$0xff]
    %v2056 = vld [vmem:[#allocation19 + $0x148] sm:$0xff]
    %v2057 = vld [vmem:[#allocation19 + $0x150] sm:$0xff]
    %v2058 = vld [vmem:[#allocation19 + $0x158] sm:$0xff]
    %v2059 = vld [vmem:[#allocation19 + $0x160] sm:$0xff]
    %v2060 = vld [vmem:[#allocation19 + $0x168] sm:$0xff]
    %v2061 = vld [vmem:[#allocation19 + $0x170] sm:$0xff]
    %v2062 = vld [vmem:[#allocation19 + $0x178] sm:$0xff]
    %2063 = vmatprep.subr.mxu0 0.0
    %2064 = vmatpush1.msra.mxu0 %v2015
    %2065 = vmatprep.subr.mxu0 0.0
    %2066 = vmatpush1.msra.mxu0 %v2016
    %2067 = vmatprep.subr.mxu0 0.0
    %2068 = vmatpush1.msra.mxu0 %v2017
    %2069 = vmatprep.subr.mxu0 0.0
    %2070 = vmatpush1.msra.mxu0 %v2018
    %2071 = vmatprep.subr.mxu0 0.0
    %2072 = vmatpush1.msra.mxu0 %v2019
    %2073 = vmatprep.subr.mxu0 0.0
    %2074 = vmatpush1.msra.mxu0 %v2020
    %2075 = vmatprep.subr.mxu0 0.0
    %2076 = vmatpush1.msra.mxu0 %v2021
    %2077 = vmatprep.subr.mxu0 0.0
    %2078 = vmatpush1.msra.mxu0 %v2022
    %2079 = vmatprep.subr.mxu0 0.0
    %2080 = vmatpush1.msra.mxu0 %v2023
    %2081 = vmatprep.subr.mxu0 0.0
    %2082 = vmatpush1.msra.mxu0 %v2024
    %2083 = vmatprep.subr.mxu0 0.0
    %2084 = vmatpush1.msra.mxu0 %v2025
    %2085 = vmatprep.subr.mxu0 0.0
    %2086 = vmatpush1.msra.mxu0 %v2026
    %2087 = vmatprep.subr.mxu0 0.0
    %2088 = vmatpush1.msra.mxu0 %v2027
    %2089 = vmatprep.subr.mxu0 0.0
    %2090 = vmatpush1.msra.mxu0 %v2028
    %2091 = vmatprep.subr.mxu0 0.0
    %2092 = vmatpush1.msra.mxu0 %v2029
    %2093 = vmatprep.subr.mxu0 0.0
    %2094 = vmatpush1.msra.mxu0 %v2030
    %2095 = vmatprep.subr.mxu0 0.0
    %2096 = vmatpush1.msra.mxu0 %v2031
    %2097 = vmatprep.subr.mxu0 0.0
    %2098 = vmatpush1.msra.mxu0 %v2032
    %2099 = vmatprep.subr.mxu0 0.0
    %2100 = vmatpush1.msra.mxu0 %v2033
    %2101 = vmatprep.subr.mxu0 0.0
    %2102 = vmatpush1.msra.mxu0 %v2034
    %2103 = vmatprep.subr.mxu0 0.0
    %2104 = vmatpush1.msra.mxu0 %v2035
    %2105 = vmatprep.subr.mxu0 0.0
    %2106 = vmatpush1.msra.mxu0 %v2036
    %2107 = vmatprep.subr.mxu0 0.0
    %2108 = vmatpush1.msra.mxu0 %v2037
    %2109 = vmatprep.subr.mxu0 0.0
    %2110 = vmatpush1.msra.mxu0 %v2038
    %2111 = vmatprep.subr.mxu0 0.0
    %2112 = vmatpush1.msra.mxu0 %v2039
    %2113 = vmatprep.subr.mxu0 0.0
    %2114 = vmatpush1.msra.mxu0 %v2040
    %2115 = vmatprep.subr.mxu0 0.0
    %2116 = vmatpush1.msra.mxu0 %v2041
    %2117 = vmatprep.subr.mxu0 0.0
    %2118 = vmatpush1.msra.mxu0 %v2042
    %2119 = vmatprep.subr.mxu0 0.0
    %2120 = vmatpush1.msra.mxu0 %v2043
    %2121 = vmatprep.subr.mxu0 0.0
    %2122 = vmatpush1.msra.mxu0 %v2044
    %2123 = vmatprep.subr.mxu0 0.0
    %2124 = vmatpush1.msra.mxu0 %v2045
    %2125 = vmatprep.subr.mxu0 0.0
    %2126 = vmatpush1.msra.mxu0 %v2046
    %2127 = vmatprep.mubr.f32.mxu0 %v2007
    %2128 = vmatmul.mubr.f32.gmra.mrb[0].mxu0 %v2002
    %v2129 = vpop.f32.mrb[0].mxu0
    %v2130 = vadd.f32 0.0, %v2129
    %v2131 = vpop.f32.mrb[0].mxu0
    %2132 = vdwg.mxu0
    %2133 = vmatprep.subr.mxu0 0.0
    %2134 = vmatpush1.msra.mxu0 %v2047
    %2135 = vmatprep.subr.mxu0 0.0
    %2136 = vmatpush1.msra.mxu0 %v2048
    %2137 = vmatprep.subr.mxu0 0.0
    %2138 = vmatpush1.msra.mxu0 %v2049
    %2139 = vmatprep.subr.mxu0 0.0
    %2140 = vmatpush1.msra.mxu0 %v2050
    %2141 = vmatprep.subr.mxu0 0.0
    %2142 = vmatpush1.msra.mxu0 %v2051
    %2143 = vmatprep.subr.mxu0 0.0
    %2144 = vmatpush1.msra.mxu0 %v2052
    %2145 = vmatprep.subr.mxu0 0.0
    %2146 = vmatpush1.msra.mxu0 %v2053
    %2147 = vmatprep.subr.mxu0 0.0
    %2148 = vmatpush1.msra.mxu0 %v2054
    %2149 = vmatprep.subr.mxu0 0.0
    %2150 = vmatpush1.msra.mxu0 %v2055
    %2151 = vmatprep.subr.mxu0 0.0
    %2152 = vmatpush1.msra.mxu0 %v2056
    %2153 = vmatprep.subr.mxu0 0.0
    %2154 = vmatpush1.msra.mxu0 %v2057
    %2155 = vmatprep.subr.mxu0 0.0
    %2156 = vmatpush1.msra.mxu0 %v2058
    %2157 = vmatprep.subr.mxu0 0.0
    %2158 = vmatpush1.msra.mxu0 %v2059
    %2159 = vmatprep.subr.mxu0 0.0
    %2160 = vmatpush1.msra.mxu0 %v2060
    %2161 = vmatprep.subr.mxu0 0.0
    %2162 = vmatpush1.msra.mxu0 %v2061
    %2163 = vmatprep.subr.mxu0 0.0
    %2164 = vmatpush1.msra.mxu0 %v2062
    %2165 = vmatprep.subr.mxu0 0.0
    %2166 = vmatpush1.msra.mxu0 0.0
    %2167 = vmatprep.subr.mxu0 0.0
    %2168 = vmatpush1.msra.mxu0 0.0
    %2169 = vmatprep.subr.mxu0 0.0
    %2170 = vmatpush1.msra.mxu0 0.0
    %2171 = vmatprep.subr.mxu0 0.0
    %2172 = vmatpush1.msra.mxu0 0.0
    %2173 = vmatprep.subr.mxu0 0.0
    %2174 = vmatpush1.msra.mxu0 0.0
    %2175 = vmatprep.subr.mxu0 0.0
    %2176 = vmatpush1.msra.mxu0 0.0
    %2177 = vmatprep.subr.mxu0 0.0
    %2178 = vmatpush1.msra.mxu0 0.0
    %2179 = vmatprep.subr.mxu0 0.0
    %2180 = vmatpush1.msra.mxu0 0.0
    %2181 = vmatprep.subr.mxu0 0.0
    %2182 = vmatpush1.msra.mxu0 0.0
    %2183 = vmatprep.subr.mxu0 0.0
    %2184 = vmatpush1.msra.mxu0 0.0
    %2185 = vmatprep.subr.mxu0 0.0
    %2186 = vmatpush1.msra.mxu0 0.0
    %2187 = vmatprep.subr.mxu0 0.0
    %2188 = vmatpush1.msra.mxu0 0.0
    %2189 = vmatprep.subr.mxu0 0.0
    %2190 = vmatpush1.msra.mxu0 0.0
    %2191 = vmatprep.subr.mxu0 0.0
    %2192 = vmatpush1.msra.mxu0 0.0
    %2193 = vmatprep.subr.mxu0 0.0
    %2194 = vmatpush1.msra.mxu0 0.0
    %2195 = vmatprep.subr.mxu0 0.0
    %2196 = vmatpush1.msra.mxu0 0.0
    %2197 = vmatprep.mubr.f32.mxu0 0.0
    %2198 = vmatmul.mubr.f32.gmra.mrb[0].mxu0 %v2012
    %v2199 = vpop.f32.mrb[0].mxu0
    %v2200 = vadd.f32 %v2130, %v2199
    %v2201 = vpop.f32.mrb[0].mxu0
    %2202 = vdwg.mxu0
    %vm2203 = vcmask 15360
    %2204 = vst.msk [vmem:[%s17] sm:$0xff] %vm2203, %v2200
    // Predicated region
    $region118: #{forward.1} parent=1 // pred_check
      _
    $region119: #{forward.1} parent=1 // pred_check_branch
      %2206 = sbr.rel (0) target = $region121
    $region120: #{forward.1} parent=1 // pred_region
      _
    $region121: #{forward.1} parent=1 // pred_fallthru
      _
    // Predicated region
    $region122: #{forward.1} parent=1 // pred_check
      _
    $region123: #{forward.1} parent=1 // pred_check_branch
      %2208 = sbr.rel (0) target = $region125
    $region124: #{forward.1} parent=1 // pred_region
      _
    $region125: #{forward.1} parent=1 // pred_fallthru
      _
    %2209 = vsyncpa [#allocation3], 1
    %2210 = vsyncpa [#allocation5], 1
    %2211 = vsyncpa [#allocation8], 1
    %2212 = vsyncpa [#allocation11], 1
    %2213 = vsyncpa [#allocation14], 1
    %2214 = vsyncpa [#allocation17], 1
    %2215 = vsyncpa [#allocation20], 1

</llo_original>
